<compile_context>
chip_gen: v6e
topology: v6e:2x2x1
jax: 0.10.0
libtpu: 0.0.40
codegen_flags: <defaults>
</compile_context>

<pallas_src>
import functools
import math

import jax
import jax.numpy as jnp
from jax.experimental import pallas as pl
from jax.experimental.pallas import tpu as pltpu


_LOG_2PI = math.log(2.0 * math.pi)


# ----------------------------------------------------------------------------
# Pallas kernel: Stein (Langevin) Gram matrices for all T tasks + fused
# per-task Gaussian log-marginal-likelihood -> single scalar output.
#
# base kernel:  k(x, y)  = p1 * exp(-||x - y||^2 / p2)
# stein kernel: k0(x, y) = k(x,y) * [ 2d/p2 - 4 r2 / p2^2
#                                     + (2/p2)(x.s(x) + y.s(y) - x.s(y) - s(x).y)
#                                     + s(x).s(y) ]
# K           = k0 + beta_cstkernel + lam * I
# output      = sum_t [ 0.5*y^T K^-1 y + 0.5*logdet(K) + 0.5*b*log(2*pi) ]
# ----------------------------------------------------------------------------
def _fused_stein_mll_kernel(params_ref, x_ref, s_ref, y_ref, o_ref, *, dim):
    p1 = params_ref[0]
    p2 = params_ref[1]
    beta = params_ref[2]
    lam = params_ref[3]

    x = x_ref[...]                       # (T, b, d) float32
    s = s_ref[...]                       # (T, b, d) float32
    yv = y_ref[...]                      # (T, b, 1) float32
    t, b, _ = x.shape

    inv_p2 = 1.0 / p2
    two_inv_p2 = 2.0 * inv_p2

    # Three lane-aligned Grams; the symmetric cross term uses the identity
    # xs + sx = uu - xx - ss with u = x + s (no concat, no quadrant slicing).
    u = x + s
    xx = jnp.einsum('tid,tjd->tij', x, x, preferred_element_type=jnp.float32)
    ss = jnp.einsum('tid,tjd->tij', s, s, preferred_element_type=jnp.float32)
    uu = jnp.einsum('tid,tjd->tij', u, u, preferred_element_type=jnp.float32)
    xs_plus_sx = uu - xx - ss            # x_i.s_j + s_i.x_j

    x_sq = jnp.sum(x * x, axis=-1)       # ||x_i||^2      (T, b)
    diag_xs = jnp.sum(x * s, axis=-1)    # x_i . s_i      (T, b)

    r2 = x_sq[:, :, None] + x_sq[:, None, :] - 2.0 * xx
    r2 = jnp.maximum(r2, 0.0)

    kbase = p1 * jnp.exp(-r2 * inv_p2)

    term_divdiv = 2.0 * float(dim) * inv_p2 - 4.0 * r2 * (inv_p2 * inv_p2)
    term_cross = two_inv_p2 * (
        diag_xs[:, :, None] + diag_xs[:, None, :] - xs_plus_sx)

    k0 = kbase * (term_divdiv + term_cross + ss) + beta

    row = jax.lax.broadcasted_iota(jnp.int32, (t, b, b), 1)
    col = jax.lax.broadcasted_iota(jnp.int32, (t, b, b), 2)
    A = jnp.where(row == col, k0 + lam, k0)          # K = k0 + beta + lam*I

    # ---- fused per-task MVN(0, K) log-prob via unrolled LDL^T elimination ----
    # K SPD -> no pivoting.  b is static (batch size) -> fully unrolled.
    row_ids = jax.lax.broadcasted_iota(jnp.int32, (t, b, 1), 1)
    quad = jnp.zeros((t, 1, 1), jnp.float32)         # y^T K^-1 y
    logdet = jnp.zeros((t, 1, 1), jnp.float32)       # logdet(K)
    for j in range(b):
        pj = A[:, j:j + 1, j:j + 1]                  # pivot d_j        (T,1,1)
        yj = yv[:, j:j + 1, :]                       # z_j = (L^-1 y)_j (T,1,1)
        colj = A[:, :, j:j + 1]                      # column j         (T,b,1)
        rowj = A[:, j:j + 1, :]                      # row j            (T,1,b)
        inv_p = 1.0 / pj
        quad = quad + yj * yj * inv_p
        logdet = logdet + jnp.log(pj)
        c = jnp.where(row_ids > j, colj * inv_p, 0.0)   # multipliers L[:, j]
        A = A - c * rowj                             # rank-1 trailing update
        yv = yv - c * yj                             # forward substitution

    # neg log mll = sum_t [0.5*quad_t + 0.5*logdet_t + 0.5*b*log(2*pi)]
    ql = quad + logdet                               # (T, 1, 1)
    tot = ql[0]
    for tt in range(1, t):                           # T tiny & static: unroll
        tot = tot + ql[tt]
    o_ref[...] = 0.5 * tot + (0.5 * float(b) * float(t) * _LOG_2PI)


def neg_log_mll_pallas(params, x_b, s_b, y_b):
    """params: (4,) f32 [p1, p2, beta, lam]; x_b, s_b: (T,b,d); y_b: (T,b,1)."""
    _, _, d = x_b.shape
    kernel = functools.partial(_fused_stein_mll_kernel, dim=d)
    out = pl.pallas_call(
        kernel,
        out_shape=jax.ShapeDtypeStruct((1, 1), jnp.float32),
        in_specs=[
            pl.BlockSpec(memory_space=pltpu.SMEM),   # params (4,) scalars
            pl.BlockSpec(memory_space=pltpu.VMEM),   # X_b (T, b, d), whole slab
            pl.BlockSpec(memory_space=pltpu.VMEM),   # S_b (T, b, d), whole slab
            pl.BlockSpec(memory_space=pltpu.VMEM),   # Y_b (T, b, 1), whole slab
        ],
        out_specs=pl.BlockSpec(memory_space=pltpu.VMEM),
    )(params, x_b, s_b, y_b)
    return out[0, 0]


# ----------------------------------------------------------------------------
# Module-equivalent wrapper
# ----------------------------------------------------------------------------
class NegLogMarginalLikMRIMultidatsMatKernel:
    def __init__(self, batch_size, Xs_tensor, Ys_tensor, scores_Tensor,
                 flag_if_use_medianheuristic=False):
        T, m, d = Xs_tensor.shape
        self.T, self.m, self.d = T, m, d
        self.Xs = Xs_tensor
        self.Ys = Ys_tensor
        self.scores = scores_Tensor
        self.batch_size = batch_size
        # Deterministic parameter init (flag_if_use_medianheuristic == False,
        # stein base kernel: parm1_raw = log(1), parm2_raw = log(10)).
        self.base_kernel_parm1_raw = jnp.log(jnp.ones((1,), jnp.float32))
        self.base_kernel_parm2_raw = jnp.log(jnp.ones((1,), jnp.float32) * 10.0)

    def forward(self, batch_sample_indices, beta_cstkernel=1.0):
        assert batch_sample_indices.shape[0] == self.batch_size
        p1 = jnp.exp(self.base_kernel_parm1_raw)[0]
        p2 = jnp.exp(self.base_kernel_parm2_raw)[0]
        lam = jnp.float32(1e-6)

        idx = batch_sample_indices
        X_b = self.Xs[:, idx, :]                                        # (T, b, d)
        Y_b = self.Ys[:, idx, :]                                        # (T, b, 1)
        task_ids = jnp.arange(self.T)
        # Matches torch: score_X_l_b = scores_Tensor[t, batch_idx, t, :]
        # (double-t diagonal task selection).
        S_b = self.scores[task_ids[:, None], idx[None, :],
                          task_ids[:, None], :]                         # (T, b, d)

        params = jnp.stack(
            [p1, p2, jnp.float32(beta_cstkernel), lam]).astype(jnp.float32)

        return neg_log_mll_pallas(params,
                                  X_b.astype(jnp.float32),
                                  S_b.astype(jnp.float32),
                                  Y_b.astype(jnp.float32))


# ----------------------------------------------------------------------------
# Pure-JAX reference (matches the torch module's math) for a numerical check.
# ----------------------------------------------------------------------------
def _reference_neg_log_mll(X_b, S_b, Y_b, p1, p2, beta, lam):
    T, b, d = X_b.shape

    def per_task(x, s, y):
        xx = x @ x.T
        ss = s @ s.T
        xs = x @ s.T
        x_sq = jnp.sum(x * x, -1)
        diag_xs = jnp.sum(x * s, -1)
        r2 = jnp.maximum(x_sq[:, None] + x_sq[None, :] - 2.0 * xx, 0.0)
        k = p1 * jnp.exp(-r2 / p2)
        term = (2.0 * d / p2 - 4.0 * r2 / p2 ** 2
                + (2.0 / p2) * (diag_xs[:, None] + diag_xs[None, :] - xs - xs.T)
                + ss)
        K = k * term + beta + lam * jnp.eye(b, dtype=jnp.float32)
        y1 = y[:, 0]
        L = jnp.linalg.cholesky(K)
        alpha = jax.scipy.linalg.cho_solve((L, True), y1[:, None])[:, 0]
        quad = jnp.dot(y1, alpha)
        logdet = 2.0 * jnp.sum(jnp.log(jnp.diag(L)))
        return -0.5 * quad - 0.5 * logdet - 0.5 * b * jnp.log(2.0 * jnp.pi)

    return -jnp.sum(jax.vmap(per_task)(X_b, S_b, Y_b))


if __name__ == "__main__":
    key = jax.random.PRNGKey(0)
    T, m, d, batch_size = 3, 16, 8, 8

    k1, k2, k3 = jax.random.split(key, 3)
    Xs = jax.random.normal(k1, (T, m, d), dtype=jnp.float32)
    Ys = jax.random.normal(k2, (T, m, 1), dtype=jnp.float32)
    scores = jax.random.normal(k3, (T, m, T, d), dtype=jnp.float32)

    batch_sample_indices = jnp.arange(batch_size, dtype=jnp.int32)

    module = NegLogMarginalLikMRIMultidatsMatKernel(
        batch_size, Xs, Ys, scores, flag_if_use_medianheuristic=False)

    neg_log_mll = module.forward(batch_sample_indices, beta_cstkernel=1.0)
    neg_log_mll = jax.block_until_ready(neg_log_mll)
    assert neg_log_mll.shape == () and jnp.isfinite(neg_log_mll)

    # Numerical cross-check against a pure-JAX reference.
    idx = batch_sample_indices
    task_ids = jnp.arange(T)
    X_b = Xs[:, idx, :]
    Y_b = Ys[:, idx, :]
    S_b = scores[task_ids[:, None], idx[None, :], task_ids[:, None], :]
    ref = _reference_neg_log_mll(X_b, S_b, Y_b,
                                 jnp.float32(1.0), jnp.float32(10.0),
                                 jnp.float32(1.0), jnp.float32(1e-6))
    ref = jax.block_until_ready(ref)
    assert jnp.allclose(neg_log_mll, ref, rtol=1e-3, atol=1e-3), (
        f"pallas={float(neg_log_mll)} ref={float(ref)}")

    print("KERNEL_OK")
</pallas_src>

<mosaic_0001>
module attributes {stable_mosaic.version = 11 : i64} {
  func.func @_fused_stein_mll_kernel(%arg0: memref<4xf32, #tpu.memory_space<smem>>, %arg1: memref<3x8x8xf32, #tpu.memory_space<vmem>>, %arg2: memref<3x8x8xf32, #tpu.memory_space<vmem>>, %arg3: memref<3x8x1xf32, #tpu.memory_space<vmem>>, %arg4: memref<1x1xf32, #tpu.memory_space<vmem>>) attributes {dimension_semantics = [], scalar_prefetch = 0 : i64, scratch_operands = 0 : i64, tpu.core_type = #tpu.core_type<tc>} {
    %c0 = arith.constant 0 : index
    %0 = memref.load %arg0[%c0] : memref<4xf32, #tpu.memory_space<smem>>
    %c1 = arith.constant 1 : index
    %1 = memref.load %arg0[%c1] : memref<4xf32, #tpu.memory_space<smem>>
    %c2 = arith.constant 2 : index
    %2 = memref.load %arg0[%c2] : memref<4xf32, #tpu.memory_space<smem>>
    %c3 = arith.constant 3 : index
    %3 = memref.load %arg0[%c3] : memref<4xf32, #tpu.memory_space<smem>>
    %c0_0 = arith.constant 0 : index
    %c0_1 = arith.constant 0 : index
    %c0_2 = arith.constant 0 : index
    %4 = vector.load %arg1[%c0_0, %c0_1, %c0_2] : memref<3x8x8xf32, #tpu.memory_space<vmem>>, vector<3x8x8xf32>
    %c0_3 = arith.constant 0 : index
    %c0_4 = arith.constant 0 : index
    %c0_5 = arith.constant 0 : index
    %5 = vector.load %arg2[%c0_3, %c0_4, %c0_5] : memref<3x8x8xf32, #tpu.memory_space<vmem>>, vector<3x8x8xf32>
    %c0_6 = arith.constant 0 : index
    %c0_7 = arith.constant 0 : index
    %c0_8 = arith.constant 0 : index
    %6 = vector.load %arg3[%c0_6, %c0_7, %c0_8] : memref<3x8x1xf32, #tpu.memory_space<vmem>>, vector<3x8x1xf32>
    %cst = arith.constant 1.000000e+00 : f32
    %7 = arith.divf %cst, %1 : f32
    %cst_9 = arith.constant 2.000000e+00 : f32
    %8 = arith.mulf %cst_9, %7 : f32
    %9 = arith.addf %4, %5 : vector<3x8x8xf32>
    "tpu.trace_start"() <{level = 10 : i32, message = "tid,tjd->tij"}> : () -> ()
    %cst_10 = arith.constant dense<0.000000e+00> : vector<3x8x8xf32>
    %10 = tpu.matmul %4, %4, %cst_10 {dimension_numbers = #tpu.dot_dimension_numbers<[2], [2], [1], [1], [0, 0, 0, 1, 1, 1], [0], [0]>} : vector<3x8x8xf32>, vector<3x8x8xf32>, vector<3x8x8xf32> -> vector<3x8x8xf32>
    %cst_11 = arith.constant dense<0.000000e+00> : vector<3x8x8xf32>
    %11 = tpu.matmul %5, %5, %cst_11 {dimension_numbers = #tpu.dot_dimension_numbers<[2], [2], [1], [1], [0, 0, 0, 1, 1, 1], [0], [0]>} : vector<3x8x8xf32>, vector<3x8x8xf32>, vector<3x8x8xf32> -> vector<3x8x8xf32>
    %cst_12 = arith.constant dense<0.000000e+00> : vector<3x8x8xf32>
    %12 = tpu.matmul %9, %9, %cst_12 {dimension_numbers = #tpu.dot_dimension_numbers<[2], [2], [1], [1], [0, 0, 0, 1, 1, 1], [0], [0]>} : vector<3x8x8xf32>, vector<3x8x8xf32>, vector<3x8x8xf32> -> vector<3x8x8xf32>
    "tpu.trace_stop"() : () -> ()
    %13 = arith.subf %12, %10 : vector<3x8x8xf32>
    %14 = arith.subf %13, %11 : vector<3x8x8xf32>
    %15 = arith.mulf %4, %4 : vector<3x8x8xf32>
    %cst_13 = arith.constant dense<0.000000e+00> : vector<3x8xf32>
    %16 = vector.multi_reduction <add>, %15, %cst_13 [2] : vector<3x8x8xf32> to vector<3x8xf32>
    %17 = arith.mulf %4, %5 : vector<3x8x8xf32>
    %cst_14 = arith.constant dense<0.000000e+00> : vector<3x8xf32>
    %18 = vector.multi_reduction <add>, %17, %cst_14 [2] : vector<3x8x8xf32> to vector<3x8xf32>
    %19 = vector.shape_cast %16 : vector<3x8xf32> to vector<3x8x1xf32>
    %20 = vector.shape_cast %16 : vector<3x8xf32> to vector<3x1x8xf32>
    %21 = vector.broadcast %19 : vector<3x8x1xf32> to vector<3x8x8xf32>
    %22 = vector.broadcast %20 : vector<3x1x8xf32> to vector<3x8x8xf32>
    %23 = arith.addf %21, %22 : vector<3x8x8xf32>
    %cst_15 = arith.constant 2.000000e+00 : f32
    %24 = vector.broadcast %cst_15 : f32 to vector<3x8x8xf32>
    %25 = arith.mulf %24, %10 : vector<3x8x8xf32>
    %26 = arith.subf %23, %25 : vector<3x8x8xf32>
    %cst_16 = arith.constant 0.000000e+00 : f32
    %27 = vector.broadcast %cst_16 : f32 to vector<3x8x8xf32>
    %28 = arith.maximumf %26, %27 : vector<3x8x8xf32>
    %cst_17 = arith.constant 0.000000e+00 : f32
    %29 = vector.broadcast %cst_17 : f32 to vector<3x8x8xf32>
    %30 = arith.subf %29, %28 : vector<3x8x8xf32>
    %31 = vector.broadcast %7 : f32 to vector<3x8x8xf32>
    %32 = arith.mulf %30, %31 : vector<3x8x8xf32>
    %33 = math.exp %32 : vector<3x8x8xf32>
    %34 = vector.broadcast %0 : f32 to vector<3x8x8xf32>
    %35 = arith.mulf %34, %33 : vector<3x8x8xf32>
    %cst_18 = arith.constant 1.600000e+01 : f32
    %36 = arith.mulf %cst_18, %7 : f32
    %cst_19 = arith.constant 4.000000e+00 : f32
    %37 = vector.broadcast %cst_19 : f32 to vector<3x8x8xf32>
    %38 = arith.mulf %37, %28 : vector<3x8x8xf32>
    %39 = arith.mulf %7, %7 : f32
    %40 = vector.broadcast %39 : f32 to vector<3x8x8xf32>
    %41 = arith.mulf %38, %40 : vector<3x8x8xf32>
    %42 = vector.broadcast %36 : f32 to vector<3x8x8xf32>
    %43 = arith.subf %42, %41 : vector<3x8x8xf32>
    %44 = vector.shape_cast %18 : vector<3x8xf32> to vector<3x8x1xf32>
    %45 = vector.shape_cast %18 : vector<3x8xf32> to vector<3x1x8xf32>
    %46 = vector.broadcast %44 : vector<3x8x1xf32> to vector<3x8x8xf32>
    %47 = vector.broadcast %45 : vector<3x1x8xf32> to vector<3x8x8xf32>
    %48 = arith.addf %46, %47 : vector<3x8x8xf32>
    %49 = arith.subf %48, %14 : vector<3x8x8xf32>
    %50 = vector.broadcast %8 : f32 to vector<3x8x8xf32>
    %51 = arith.mulf %50, %49 : vector<3x8x8xf32>
    %52 = arith.addf %43, %51 : vector<3x8x8xf32>
    %53 = arith.addf %52, %11 : vector<3x8x8xf32>
    %54 = arith.mulf %35, %53 : vector<3x8x8xf32>
    %55 = vector.broadcast %2 : f32 to vector<3x8x8xf32>
    %56 = arith.addf %54, %55 : vector<3x8x8xf32>
    %57 = tpu.iota {dimensions = array<i32: 1>} : vector<3x8x8xi32>
    %58 = tpu.iota {dimensions = array<i32: 2>} : vector<3x8x8xi32>
    %59 = arith.cmpi eq, %57, %58 : vector<3x8x8xi32>
    %60 = vector.broadcast %3 : f32 to vector<3x8x8xf32>
    %61 = arith.addf %56, %60 : vector<3x8x8xf32>
    %62 = arith.select %59, %61, %56 : vector<3x8x8xi1>, vector<3x8x8xf32>
    %63 = tpu.iota {dimensions = array<i32: 1>} : vector<3x8x1xi32>
    %cst_20 = arith.constant 0.000000e+00 : f32
    %64 = vector.broadcast %cst_20 : f32 to vector<3x1x1xf32>
    %cst_21 = arith.constant 0.000000e+00 : f32
    %65 = vector.broadcast %cst_21 : f32 to vector<3x1x1xf32>
    %66 = vector.extract_strided_slice %62 {offsets = [0, 0, 0], sizes = [3, 1, 1], strides = [1, 1, 1]} : vector<3x8x8xf32> to vector<3x1x1xf32>
    %67 = vector.extract_strided_slice %6 {offsets = [0, 0, 0], sizes = [3, 1, 1], strides = [1, 1, 1]} : vector<3x8x1xf32> to vector<3x1x1xf32>
    %68 = vector.extract_strided_slice %62 {offsets = [0, 0, 0], sizes = [3, 8, 1], strides = [1, 1, 1]} : vector<3x8x8xf32> to vector<3x8x1xf32>
    %69 = vector.extract_strided_slice %62 {offsets = [0, 0, 0], sizes = [3, 1, 8], strides = [1, 1, 1]} : vector<3x8x8xf32> to vector<3x1x8xf32>
    %cst_22 = arith.constant 1.000000e+00 : f32
    %70 = vector.broadcast %cst_22 : f32 to vector<3x1x1xf32>
    %71 = arith.divf %70, %66 : vector<3x1x1xf32>
    %72 = arith.mulf %67, %67 : vector<3x1x1xf32>
    %73 = arith.mulf %72, %71 : vector<3x1x1xf32>
    %74 = arith.addf %64, %73 : vector<3x1x1xf32>
    %75 = math.log %66 : vector<3x1x1xf32>
    %76 = arith.addf %65, %75 : vector<3x1x1xf32>
    %c0_i32 = arith.constant 0 : i32
    %77 = vector.broadcast %c0_i32 : i32 to vector<3x8x1xi32>
    %78 = arith.cmpi sgt, %63, %77 : vector<3x8x1xi32>
    %79 = vector.broadcast %71 : vector<3x1x1xf32> to vector<3x8x1xf32>
    %80 = arith.mulf %68, %79 : vector<3x8x1xf32>
    %cst_23 = arith.constant 0.000000e+00 : f32
    %81 = vector.broadcast %cst_23 : f32 to vector<3x8x1xf32>
    %82 = arith.select %78, %80, %81 : vector<3x8x1xi1>, vector<3x8x1xf32>
    %83 = vector.broadcast %82 : vector<3x8x1xf32> to vector<3x8x8xf32>
    %84 = vector.broadcast %69 : vector<3x1x8xf32> to vector<3x8x8xf32>
    %85 = arith.mulf %83, %84 : vector<3x8x8xf32>
    %86 = arith.subf %62, %85 : vector<3x8x8xf32>
    %87 = vector.broadcast %67 : vector<3x1x1xf32> to vector<3x8x1xf32>
    %88 = arith.mulf %82, %87 : vector<3x8x1xf32>
    %89 = arith.subf %6, %88 : vector<3x8x1xf32>
    %90 = vector.extract_strided_slice %86 {offsets = [0, 1, 1], sizes = [3, 1, 1], strides = [1, 1, 1]} : vector<3x8x8xf32> to vector<3x1x1xf32>
    %91 = vector.extract_strided_slice %89 {offsets = [0, 1, 0], sizes = [3, 1, 1], strides = [1, 1, 1]} : vector<3x8x1xf32> to vector<3x1x1xf32>
    %92 = vector.extract_strided_slice %86 {offsets = [0, 0, 1], sizes = [3, 8, 1], strides = [1, 1, 1]} : vector<3x8x8xf32> to vector<3x8x1xf32>
    %93 = vector.extract_strided_slice %86 {offsets = [0, 1, 0], sizes = [3, 1, 8], strides = [1, 1, 1]} : vector<3x8x8xf32> to vector<3x1x8xf32>
    %cst_24 = arith.constant 1.000000e+00 : f32
    %94 = vector.broadcast %cst_24 : f32 to vector<3x1x1xf32>
    %95 = arith.divf %94, %90 : vector<3x1x1xf32>
    %96 = arith.mulf %91, %91 : vector<3x1x1xf32>
    %97 = arith.mulf %96, %95 : vector<3x1x1xf32>
    %98 = arith.addf %74, %97 : vector<3x1x1xf32>
    %99 = math.log %90 : vector<3x1x1xf32>
    %100 = arith.addf %76, %99 : vector<3x1x1xf32>
    %c1_i32 = arith.constant 1 : i32
    %101 = vector.broadcast %c1_i32 : i32 to vector<3x8x1xi32>
    %102 = arith.cmpi sgt, %63, %101 : vector<3x8x1xi32>
    %103 = vector.broadcast %95 : vector<3x1x1xf32> to vector<3x8x1xf32>
    %104 = arith.mulf %92, %103 : vector<3x8x1xf32>
    %cst_25 = arith.constant 0.000000e+00 : f32
    %105 = vector.broadcast %cst_25 : f32 to vector<3x8x1xf32>
    %106 = arith.select %102, %104, %105 : vector<3x8x1xi1>, vector<3x8x1xf32>
    %107 = vector.broadcast %106 : vector<3x8x1xf32> to vector<3x8x8xf32>
    %108 = vector.broadcast %93 : vector<3x1x8xf32> to vector<3x8x8xf32>
    %109 = arith.mulf %107, %108 : vector<3x8x8xf32>
    %110 = arith.subf %86, %109 : vector<3x8x8xf32>
    %111 = vector.broadcast %91 : vector<3x1x1xf32> to vector<3x8x1xf32>
    %112 = arith.mulf %106, %111 : vector<3x8x1xf32>
    %113 = arith.subf %89, %112 : vector<3x8x1xf32>
    %114 = vector.extract_strided_slice %110 {offsets = [0, 2, 2], sizes = [3, 1, 1], strides = [1, 1, 1]} : vector<3x8x8xf32> to vector<3x1x1xf32>
    %115 = vector.extract_strided_slice %113 {offsets = [0, 2, 0], sizes = [3, 1, 1], strides = [1, 1, 1]} : vector<3x8x1xf32> to vector<3x1x1xf32>
    %116 = vector.extract_strided_slice %110 {offsets = [0, 0, 2], sizes = [3, 8, 1], strides = [1, 1, 1]} : vector<3x8x8xf32> to vector<3x8x1xf32>
    %117 = vector.extract_strided_slice %110 {offsets = [0, 2, 0], sizes = [3, 1, 8], strides = [1, 1, 1]} : vector<3x8x8xf32> to vector<3x1x8xf32>
    %cst_26 = arith.constant 1.000000e+00 : f32
    %118 = vector.broadcast %cst_26 : f32 to vector<3x1x1xf32>
    %119 = arith.divf %118, %114 : vector<3x1x1xf32>
    %120 = arith.mulf %115, %115 : vector<3x1x1xf32>
    %121 = arith.mulf %120, %119 : vector<3x1x1xf32>
    %122 = arith.addf %98, %121 : vector<3x1x1xf32>
    %123 = math.log %114 : vector<3x1x1xf32>
    %124 = arith.addf %100, %123 : vector<3x1x1xf32>
    %c2_i32 = arith.constant 2 : i32
    %125 = vector.broadcast %c2_i32 : i32 to vector<3x8x1xi32>
    %126 = arith.cmpi sgt, %63, %125 : vector<3x8x1xi32>
    %127 = vector.broadcast %119 : vector<3x1x1xf32> to vector<3x8x1xf32>
    %128 = arith.mulf %116, %127 : vector<3x8x1xf32>
    %cst_27 = arith.constant 0.000000e+00 : f32
    %129 = vector.broadcast %cst_27 : f32 to vector<3x8x1xf32>
    %130 = arith.select %126, %128, %129 : vector<3x8x1xi1>, vector<3x8x1xf32>
    %131 = vector.broadcast %130 : vector<3x8x1xf32> to vector<3x8x8xf32>
    %132 = vector.broadcast %117 : vector<3x1x8xf32> to vector<3x8x8xf32>
    %133 = arith.mulf %131, %132 : vector<3x8x8xf32>
    %134 = arith.subf %110, %133 : vector<3x8x8xf32>
    %135 = vector.broadcast %115 : vector<3x1x1xf32> to vector<3x8x1xf32>
    %136 = arith.mulf %130, %135 : vector<3x8x1xf32>
    %137 = arith.subf %113, %136 : vector<3x8x1xf32>
    %138 = vector.extract_strided_slice %134 {offsets = [0, 3, 3], sizes = [3, 1, 1], strides = [1, 1, 1]} : vector<3x8x8xf32> to vector<3x1x1xf32>
    %139 = vector.extract_strided_slice %137 {offsets = [0, 3, 0], sizes = [3, 1, 1], strides = [1, 1, 1]} : vector<3x8x1xf32> to vector<3x1x1xf32>
    %140 = vector.extract_strided_slice %134 {offsets = [0, 0, 3], sizes = [3, 8, 1], strides = [1, 1, 1]} : vector<3x8x8xf32> to vector<3x8x1xf32>
    %141 = vector.extract_strided_slice %134 {offsets = [0, 3, 0], sizes = [3, 1, 8], strides = [1, 1, 1]} : vector<3x8x8xf32> to vector<3x1x8xf32>
    %cst_28 = arith.constant 1.000000e+00 : f32
    %142 = vector.broadcast %cst_28 : f32 to vector<3x1x1xf32>
    %143 = arith.divf %142, %138 : vector<3x1x1xf32>
    %144 = arith.mulf %139, %139 : vector<3x1x1xf32>
    %145 = arith.mulf %144, %143 : vector<3x1x1xf32>
    %146 = arith.addf %122, %145 : vector<3x1x1xf32>
    %147 = math.log %138 : vector<3x1x1xf32>
    %148 = arith.addf %124, %147 : vector<3x1x1xf32>
    %c3_i32 = arith.constant 3 : i32
    %149 = vector.broadcast %c3_i32 : i32 to vector<3x8x1xi32>
    %150 = arith.cmpi sgt, %63, %149 : vector<3x8x1xi32>
    %151 = vector.broadcast %143 : vector<3x1x1xf32> to vector<3x8x1xf32>
    %152 = arith.mulf %140, %151 : vector<3x8x1xf32>
    %cst_29 = arith.constant 0.000000e+00 : f32
    %153 = vector.broadcast %cst_29 : f32 to vector<3x8x1xf32>
    %154 = arith.select %150, %152, %153 : vector<3x8x1xi1>, vector<3x8x1xf32>
    %155 = vector.broadcast %154 : vector<3x8x1xf32> to vector<3x8x8xf32>
    %156 = vector.broadcast %141 : vector<3x1x8xf32> to vector<3x8x8xf32>
    %157 = arith.mulf %155, %156 : vector<3x8x8xf32>
    %158 = arith.subf %134, %157 : vector<3x8x8xf32>
    %159 = vector.broadcast %139 : vector<3x1x1xf32> to vector<3x8x1xf32>
    %160 = arith.mulf %154, %159 : vector<3x8x1xf32>
    %161 = arith.subf %137, %160 : vector<3x8x1xf32>
    %162 = vector.extract_strided_slice %158 {offsets = [0, 4, 4], sizes = [3, 1, 1], strides = [1, 1, 1]} : vector<3x8x8xf32> to vector<3x1x1xf32>
    %163 = vector.extract_strided_slice %161 {offsets = [0, 4, 0], sizes = [3, 1, 1], strides = [1, 1, 1]} : vector<3x8x1xf32> to vector<3x1x1xf32>
    %164 = vector.extract_strided_slice %158 {offsets = [0, 0, 4], sizes = [3, 8, 1], strides = [1, 1, 1]} : vector<3x8x8xf32> to vector<3x8x1xf32>
    %165 = vector.extract_strided_slice %158 {offsets = [0, 4, 0], sizes = [3, 1, 8], strides = [1, 1, 1]} : vector<3x8x8xf32> to vector<3x1x8xf32>
    %cst_30 = arith.constant 1.000000e+00 : f32
    %166 = vector.broadcast %cst_30 : f32 to vector<3x1x1xf32>
    %167 = arith.divf %166, %162 : vector<3x1x1xf32>
    %168 = arith.mulf %163, %163 : vector<3x1x1xf32>
    %169 = arith.mulf %168, %167 : vector<3x1x1xf32>
    %170 = arith.addf %146, %169 : vector<3x1x1xf32>
    %171 = math.log %162 : vector<3x1x1xf32>
    %172 = arith.addf %148, %171 : vector<3x1x1xf32>
    %c4_i32 = arith.constant 4 : i32
    %173 = vector.broadcast %c4_i32 : i32 to vector<3x8x1xi32>
    %174 = arith.cmpi sgt, %63, %173 : vector<3x8x1xi32>
    %175 = vector.broadcast %167 : vector<3x1x1xf32> to vector<3x8x1xf32>
    %176 = arith.mulf %164, %175 : vector<3x8x1xf32>
    %cst_31 = arith.constant 0.000000e+00 : f32
    %177 = vector.broadcast %cst_31 : f32 to vector<3x8x1xf32>
    %178 = arith.select %174, %176, %177 : vector<3x8x1xi1>, vector<3x8x1xf32>
    %179 = vector.broadcast %178 : vector<3x8x1xf32> to vector<3x8x8xf32>
    %180 = vector.broadcast %165 : vector<3x1x8xf32> to vector<3x8x8xf32>
    %181 = arith.mulf %179, %180 : vector<3x8x8xf32>
    %182 = arith.subf %158, %181 : vector<3x8x8xf32>
    %183 = vector.broadcast %163 : vector<3x1x1xf32> to vector<3x8x1xf32>
    %184 = arith.mulf %178, %183 : vector<3x8x1xf32>
    %185 = arith.subf %161, %184 : vector<3x8x1xf32>
    %186 = vector.extract_strided_slice %182 {offsets = [0, 5, 5], sizes = [3, 1, 1], strides = [1, 1, 1]} : vector<3x8x8xf32> to vector<3x1x1xf32>
    %187 = vector.extract_strided_slice %185 {offsets = [0, 5, 0], sizes = [3, 1, 1], strides = [1, 1, 1]} : vector<3x8x1xf32> to vector<3x1x1xf32>
    %188 = vector.extract_strided_slice %182 {offsets = [0, 0, 5], sizes = [3, 8, 1], strides = [1, 1, 1]} : vector<3x8x8xf32> to vector<3x8x1xf32>
    %189 = vector.extract_strided_slice %182 {offsets = [0, 5, 0], sizes = [3, 1, 8], strides = [1, 1, 1]} : vector<3x8x8xf32> to vector<3x1x8xf32>
    %cst_32 = arith.constant 1.000000e+00 : f32
    %190 = vector.broadcast %cst_32 : f32 to vector<3x1x1xf32>
    %191 = arith.divf %190, %186 : vector<3x1x1xf32>
    %192 = arith.mulf %187, %187 : vector<3x1x1xf32>
    %193 = arith.mulf %192, %191 : vector<3x1x1xf32>
    %194 = arith.addf %170, %193 : vector<3x1x1xf32>
    %195 = math.log %186 : vector<3x1x1xf32>
    %196 = arith.addf %172, %195 : vector<3x1x1xf32>
    %c5_i32 = arith.constant 5 : i32
    %197 = vector.broadcast %c5_i32 : i32 to vector<3x8x1xi32>
    %198 = arith.cmpi sgt, %63, %197 : vector<3x8x1xi32>
    %199 = vector.broadcast %191 : vector<3x1x1xf32> to vector<3x8x1xf32>
    %200 = arith.mulf %188, %199 : vector<3x8x1xf32>
    %cst_33 = arith.constant 0.000000e+00 : f32
    %201 = vector.broadcast %cst_33 : f32 to vector<3x8x1xf32>
    %202 = arith.select %198, %200, %201 : vector<3x8x1xi1>, vector<3x8x1xf32>
    %203 = vector.broadcast %202 : vector<3x8x1xf32> to vector<3x8x8xf32>
    %204 = vector.broadcast %189 : vector<3x1x8xf32> to vector<3x8x8xf32>
    %205 = arith.mulf %203, %204 : vector<3x8x8xf32>
    %206 = arith.subf %182, %205 : vector<3x8x8xf32>
    %207 = vector.broadcast %187 : vector<3x1x1xf32> to vector<3x8x1xf32>
    %208 = arith.mulf %202, %207 : vector<3x8x1xf32>
    %209 = arith.subf %185, %208 : vector<3x8x1xf32>
    %210 = vector.extract_strided_slice %206 {offsets = [0, 6, 6], sizes = [3, 1, 1], strides = [1, 1, 1]} : vector<3x8x8xf32> to vector<3x1x1xf32>
    %211 = vector.extract_strided_slice %209 {offsets = [0, 6, 0], sizes = [3, 1, 1], strides = [1, 1, 1]} : vector<3x8x1xf32> to vector<3x1x1xf32>
    %212 = vector.extract_strided_slice %206 {offsets = [0, 0, 6], sizes = [3, 8, 1], strides = [1, 1, 1]} : vector<3x8x8xf32> to vector<3x8x1xf32>
    %213 = vector.extract_strided_slice %206 {offsets = [0, 6, 0], sizes = [3, 1, 8], strides = [1, 1, 1]} : vector<3x8x8xf32> to vector<3x1x8xf32>
    %cst_34 = arith.constant 1.000000e+00 : f32
    %214 = vector.broadcast %cst_34 : f32 to vector<3x1x1xf32>
    %215 = arith.divf %214, %210 : vector<3x1x1xf32>
    %216 = arith.mulf %211, %211 : vector<3x1x1xf32>
    %217 = arith.mulf %216, %215 : vector<3x1x1xf32>
    %218 = arith.addf %194, %217 : vector<3x1x1xf32>
    %219 = math.log %210 : vector<3x1x1xf32>
    %220 = arith.addf %196, %219 : vector<3x1x1xf32>
    %c6_i32 = arith.constant 6 : i32
    %221 = vector.broadcast %c6_i32 : i32 to vector<3x8x1xi32>
    %222 = arith.cmpi sgt, %63, %221 : vector<3x8x1xi32>
    %223 = vector.broadcast %215 : vector<3x1x1xf32> to vector<3x8x1xf32>
    %224 = arith.mulf %212, %223 : vector<3x8x1xf32>
    %cst_35 = arith.constant 0.000000e+00 : f32
    %225 = vector.broadcast %cst_35 : f32 to vector<3x8x1xf32>
    %226 = arith.select %222, %224, %225 : vector<3x8x1xi1>, vector<3x8x1xf32>
    %227 = vector.broadcast %226 : vector<3x8x1xf32> to vector<3x8x8xf32>
    %228 = vector.broadcast %213 : vector<3x1x8xf32> to vector<3x8x8xf32>
    %229 = arith.mulf %227, %228 : vector<3x8x8xf32>
    %230 = arith.subf %206, %229 : vector<3x8x8xf32>
    %231 = vector.broadcast %211 : vector<3x1x1xf32> to vector<3x8x1xf32>
    %232 = arith.mulf %226, %231 : vector<3x8x1xf32>
    %233 = arith.subf %209, %232 : vector<3x8x1xf32>
    %234 = vector.extract_strided_slice %230 {offsets = [0, 7, 7], sizes = [3, 1, 1], strides = [1, 1, 1]} : vector<3x8x8xf32> to vector<3x1x1xf32>
    %235 = vector.extract_strided_slice %233 {offsets = [0, 7, 0], sizes = [3, 1, 1], strides = [1, 1, 1]} : vector<3x8x1xf32> to vector<3x1x1xf32>
    %cst_36 = arith.constant 1.000000e+00 : f32
    %236 = vector.broadcast %cst_36 : f32 to vector<3x1x1xf32>
    %237 = arith.divf %236, %234 : vector<3x1x1xf32>
    %238 = arith.mulf %235, %235 : vector<3x1x1xf32>
    %239 = arith.mulf %238, %237 : vector<3x1x1xf32>
    %240 = arith.addf %218, %239 : vector<3x1x1xf32>
    %241 = math.log %234 : vector<3x1x1xf32>
    %242 = arith.addf %220, %241 : vector<3x1x1xf32>
    %243 = arith.addf %240, %242 : vector<3x1x1xf32>
    %244 = vector.extract_strided_slice %243 {offsets = [0, 0, 0], sizes = [1, 1, 1], strides = [1, 1, 1]} : vector<3x1x1xf32> to vector<1x1x1xf32>
    %245 = vector.shape_cast %244 : vector<1x1x1xf32> to vector<1x1xf32>
    %246 = vector.extract_strided_slice %243 {offsets = [1, 0, 0], sizes = [1, 1, 1], strides = [1, 1, 1]} : vector<3x1x1xf32> to vector<1x1x1xf32>
    %247 = vector.shape_cast %246 : vector<1x1x1xf32> to vector<1x1xf32>
    %248 = arith.addf %245, %247 : vector<1x1xf32>
    %249 = vector.extract_strided_slice %243 {offsets = [2, 0, 0], sizes = [1, 1, 1], strides = [1, 1, 1]} : vector<3x1x1xf32> to vector<1x1x1xf32>
    %250 = vector.shape_cast %249 : vector<1x1x1xf32> to vector<1x1xf32>
    %251 = arith.addf %248, %250 : vector<1x1xf32>
    %cst_37 = arith.constant 5.000000e-01 : f32
    %252 = vector.broadcast %cst_37 : f32 to vector<1x1xf32>
    %253 = arith.mulf %252, %251 : vector<1x1xf32>
    %cst_38 = arith.constant 22.0545254 : f32
    %254 = vector.broadcast %cst_38 : f32 to vector<1x1xf32>
    %255 = arith.addf %253, %254 : vector<1x1xf32>
    %c0_39 = arith.constant 0 : index
    %c0_40 = arith.constant 0 : index
    %256 = vector.load %arg4[%c0_39, %c0_40] : memref<1x1xf32, #tpu.memory_space<vmem>>, vector<1x1xf32>
    tpu.vector_store %arg4[%c0_39, %c0_40], %255 {strides = array<i32>} : memref<1x1xf32, #tpu.memory_space<vmem>>, vector<1x1xf32>,
    return
  }
}

</mosaic_0001>

<llo_original>
// kernel: tpu_custom_call.1
$region0: #{tpu_custom_call.1}
  #allocation0 [shape = 'u32[]', space=smem, size = 0x4, offset = 0x4, fixed_abs, tag = 'smem constant byte address 0x4 - core index']
  #allocation1 [shape = 'u32[144,128]{1,0:T(1,128)}', space=vmem, size = 0x12000, scoped, tag = 'internal scratch']
  %s0 = inlined_call_operand.vmem [shape: f32[4], index: 0, kind: input, shape index: {}]
  %s1 = inlined_call_operand.vmem [shape: f32[3,8,8], index: 1, kind: input, shape index: {}]
  %s2 = inlined_call_operand.hbm [shape: f32[3,8,8], index: 2, kind: input, shape index: {}]
  %s3 = inlined_call_operand.vmem [shape: f32[3,8,1], index: 3, kind: input, shape index: {}]
  %s4 = inlined_call_operand.hbm [shape: f32[1,1], index: 4, kind: output, shape index: {}]
  %s5 = sld [smem:[#allocation0]]
  $region34: #{tpu_custom_call.1} parent=0
    _
  %s7 = ssub.s32 1, %s5
  %s8 = scalar_select 0, %s7, %s5
  $region1: #{tpu_custom_call.1} parent=0
    #allocation2 [shape = 'u8[512]{0}', space=smem, size = 0x200, scoped, tag = 'input window, operand 0, single buffered']
    #allocation3 [shape = 's32[1]{0}', space=sflag, size = 0x4, scoped, tag = 'scoped memory for tpu_custom_call.1']
    #allocation4 [shape = 's32[1]{0}', space=sflag, size = 0x4, scoped, tag = 'scoped memory for tpu_custom_call.1']
    #allocation5 [shape = 's32[1]{0}', space=sflag, size = 0x4, scoped, tag = 'scoped memory for tpu_custom_call.1']
    #allocation6 [shape = 'u8[12288]{0}', space=vmem, size = 0x3000, scoped, tag = 'input window, operand 2, single buffered']
    #allocation7 [shape = 'u8[512]{0}', space=vmem, size = 0x400, scoped, tag = 'output window, operand 0, single buffered']
    %9 = vsyncpa [#allocation5], 0
    %10 = vsyncpa [#allocation3], 0
    %11 = vsyncpa [#allocation4], 0
    // Predicated region
    $region2: #{tpu_custom_call.1} parent=1 // pred_check
      _
    $region3: #{tpu_custom_call.1} parent=1 // pred_check_branch
      %13 = sbr.rel (0) target = $region5
    $region4: #{tpu_custom_call.1} parent=1 // pred_region
      %s15 = ssub.s32 16, 16
      %16 = vsyncadd [#allocation5], %s15
      %s18 = sshll.u32 %s0, 4
      %s19 = int_to_ptr.vmem [resolvable:$true] %s18
      %21 = dma.vmem_to_smem %s19, 16, [#allocation2], [#allocation5]
    $region5: #{tpu_custom_call.1} parent=1 // pred_fallthru
      _
    // Predicated region
    $region6: #{tpu_custom_call.1} parent=1 // pred_check
      _
    $region7: #{tpu_custom_call.1} parent=1 // pred_check_branch
      %23 = sbr.rel (0) target = $region9
    $region8: #{tpu_custom_call.1} parent=1 // pred_region
      _
    $region9: #{tpu_custom_call.1} parent=1 // pred_fallthru
      _
    // Predicated region
    $region10: #{tpu_custom_call.1} parent=1 // pred_check
      _
    $region11: #{tpu_custom_call.1} parent=1 // pred_check_branch
      %25 = sbr.rel (0) target = $region13
    $region12: #{tpu_custom_call.1} parent=1 // pred_region
      %s27 = ssub.s32 384, 384
      %28 = vsyncadd [#allocation3], %s27
      %s29 = sshll.u32 [#allocation6], 4
      %s30 = int_to_ptr.vmem [resolvable:$true] %s29
      %35 = dma.hbm_to_vmem [thread:$0]  %s2, 384, %s30, [#allocation3], 128, 128, 8
    $region13: #{tpu_custom_call.1} parent=1 // pred_fallthru
      _
    // Predicated region
    $region14: #{tpu_custom_call.1} parent=1 // pred_check
      _
    $region15: #{tpu_custom_call.1} parent=1 // pred_check_branch
      %37 = sbr.rel (0) target = $region17
    $region16: #{tpu_custom_call.1} parent=1 // pred_region
      _
    $region17: #{tpu_custom_call.1} parent=1 // pred_fallthru
      _
    // Predicated region
    $region18: #{tpu_custom_call.1} parent=1 // pred_check
      _
    $region19: #{tpu_custom_call.1} parent=1 // pred_check_branch
      %39 = sbr.rel (0) target = $region21
    $region20: #{tpu_custom_call.1} parent=1 // pred_region
      %40 = dma.done [#allocation5], 16
    $region21: #{tpu_custom_call.1} parent=1 // pred_fallthru
      _
    // Predicated region
    $region22: #{tpu_custom_call.1} parent=1 // pred_check
      _
    $region23: #{tpu_custom_call.1} parent=1 // pred_check_branch
      %42 = sbr.rel (0) target = $region25
    $region24: #{tpu_custom_call.1} parent=1 // pred_region
      %43 = dma.done [#allocation3], 384
    $region25: #{tpu_custom_call.1} parent=1 // pred_fallthru
      _
    %44 = sfence
    %s45 = sld [smem:[#allocation2]]
    %s46 = sld [smem:[#allocation2 + $0x1]]
    %s47 = sld [smem:[#allocation2 + $0x2]]
    %s48 = sld [smem:[#allocation2 + $0x3]]
    %v49 = vld [vmem:[%s1] sm:$0xff]
    %v50 = vld [vmem:[%s1 + $0x8] sm:$0xff]
    %v51 = vld [vmem:[%s1 + $0x10] sm:$0xff]
    %v52 = vld [vmem:[#allocation6] sm:$0xff]
    %v53 = vld [vmem:[#allocation6 + $0x8] sm:$0xff]
    %v54 = vld [vmem:[#allocation6 + $0x10] sm:$0xff]
    %v55 = vld [vmem:[%s3] sm:$0xff]
    %v56 = vld [vmem:[%s3 + $0x8] sm:$0xff]
    %v57 = vld [vmem:[%s3 + $0x10] sm:$0xff]
    %v58 = vstv %s46
    %v59 = vrcp.pop %v58
    %s60 = vtos %v59
    %s61 = smul.f32 %s60, 2.0
    %v62 = vadd.f32 %v49, %v52
    %v63 = vadd.f32 %v50, %v53
    %v64 = vadd.f32 %v51, %v54
    %vm65 = vcmask 64512
    %v67 = vsel %vm65, %v49, 0
    %69 = vmatprep.subr.mxu0 0.0
    %70 = vmatpush1.xpose.msra.mxu0 0.0
    %71 = vmatprep.subr.mxu0 0.0
    %72 = vmatpush1.xpose.msra.mxu0 0.0
    %73 = vmatprep.subr.mxu0 0.0
    %74 = vmatpush1.xpose.msra.mxu0 0.0
    %75 = vmatprep.subr.mxu0 0.0
    %76 = vmatpush1.xpose.msra.mxu0 0.0
    %77 = vmatprep.subr.mxu0 0.0
    %78 = vmatpush1.xpose.msra.mxu0 0.0
    %79 = vmatprep.subr.mxu0 0.0
    %80 = vmatpush1.xpose.msra.mxu0 0.0
    %81 = vmatprep.subr.mxu0 0.0
    %82 = vmatpush1.xpose.msra.mxu0 0.0
    %83 = vmatprep.subr.mxu0 0.0
    %84 = vmatpush1.xpose.msra.mxu0 0.0
    %85 = vmatprep.subr.mxu0 0.0
    %86 = vmatpush1.xpose.msra.mxu0 0.0
    %87 = vmatprep.subr.mxu0 0.0
    %88 = vmatpush1.xpose.msra.mxu0 0.0
    %89 = vmatprep.subr.mxu0 0.0
    %90 = vmatpush1.xpose.msra.mxu0 0.0
    %91 = vmatprep.subr.mxu0 0.0
    %92 = vmatpush1.xpose.msra.mxu0 0.0
    %93 = vmatprep.subr.mxu0 0.0
    %94 = vmatpush1.xpose.msra.mxu0 0.0
    %95 = vmatprep.subr.mxu0 0.0
    %96 = vmatpush1.xpose.msra.mxu0 0.0
    %97 = vmatprep.subr.mxu0 0.0
    %98 = vmatpush1.xpose.msra.mxu0 0.0
    %99 = vmatprep.subr.mxu0 0.0
    %100 = vmatpush1.xpose.msra.mxu0 %v67
    %101 = vmatprep.subr.mxu0 0.0
    %102 = vmatpush2.xpose.msra.mxu0 0.0
    %103 = vmatprep.subr.mxu0 0.0
    %104 = vmatpush2.xpose.msra.mxu0 0.0
    %105 = vmatprep.subr.mxu0 0.0
    %106 = vmatpush2.xpose.msra.mxu0 0.0
    %107 = vmatprep.subr.mxu0 0.0
    %108 = vmatpush2.xpose.msra.mxu0 0.0
    %109 = vmatprep.subr.mxu0 0.0
    %110 = vmatpush2.xpose.msra.mxu0 0.0
    %111 = vmatprep.subr.mxu0 0.0
    %112 = vmatpush2.xpose.msra.mxu0 0.0
    %113 = vmatprep.subr.mxu0 0.0
    %114 = vmatpush2.xpose.msra.mxu0 0.0
    %115 = vmatprep.subr.mxu0 0.0
    %116 = vmatpush2.xpose.msra.mxu0 0.0
    %117 = vmatprep.subr.mxu0 0.0
    %118 = vmatpush2.xpose.msra.mxu0 0.0
    %119 = vmatprep.subr.mxu0 0.0
    %120 = vmatpush2.xpose.msra.mxu0 0.0
    %121 = vmatprep.subr.mxu0 0.0
    %122 = vmatpush2.xpose.msra.mxu0 0.0
    %123 = vmatprep.subr.mxu0 0.0
    %124 = vmatpush2.xpose.msra.mxu0 0.0
    %125 = vmatprep.subr.mxu0 0.0
    %126 = vmatpush2.xpose.msra.mxu0 0.0
    %127 = vmatprep.subr.mxu0 0.0
    %128 = vmatpush2.xpose.msra.mxu0 0.0
    %129 = vmatprep.subr.mxu0 0.0
    %130 = vmatpush2.xpose.msra.mxu0 0.0
    %131 = vmatprep.subr.mxu0 0.0
    %132 = vmatpush2.xpose.msra.mxu0 0.0
    %133 = vmatprep.mubr.f32.mxu0 0.0
    %134 = vmatmul.mubr.f32.gmra.mxu0 %v67
    %v135 = vpop.f32.mrf.mxu0
    %v136 = vadd.f32 0.0, %v135
    %v137 = vpop.f32.mrf.mxu0
    %138 = vdwg.mxu0
    %v140 = vsel %vm65, %v50, 0
    %142 = vmatprep.subr.mxu0 0.0
    %143 = vmatpush1.xpose.msra.mxu0 0.0
    %144 = vmatprep.subr.mxu0 0.0
    %145 = vmatpush1.xpose.msra.mxu0 0.0
    %146 = vmatprep.subr.mxu0 0.0
    %147 = vmatpush1.xpose.msra.mxu0 0.0
    %148 = vmatprep.subr.mxu0 0.0
    %149 = vmatpush1.xpose.msra.mxu0 0.0
    %150 = vmatprep.subr.mxu0 0.0
    %151 = vmatpush1.xpose.msra.mxu0 0.0
    %152 = vmatprep.subr.mxu0 0.0
    %153 = vmatpush1.xpose.msra.mxu0 0.0
    %154 = vmatprep.subr.mxu0 0.0
    %155 = vmatpush1.xpose.msra.mxu0 0.0
    %156 = vmatprep.subr.mxu0 0.0
    %157 = vmatpush1.xpose.msra.mxu0 0.0
    %158 = vmatprep.subr.mxu0 0.0
    %159 = vmatpush1.xpose.msra.mxu0 0.0
    %160 = vmatprep.subr.mxu0 0.0
    %161 = vmatpush1.xpose.msra.mxu0 0.0
    %162 = vmatprep.subr.mxu0 0.0
    %163 = vmatpush1.xpose.msra.mxu0 0.0
    %164 = vmatprep.subr.mxu0 0.0
    %165 = vmatpush1.xpose.msra.mxu0 0.0
    %166 = vmatprep.subr.mxu0 0.0
    %167 = vmatpush1.xpose.msra.mxu0 0.0
    %168 = vmatprep.subr.mxu0 0.0
    %169 = vmatpush1.xpose.msra.mxu0 0.0
    %170 = vmatprep.subr.mxu0 0.0
    %171 = vmatpush1.xpose.msra.mxu0 0.0
    %172 = vmatprep.subr.mxu0 0.0
    %173 = vmatpush1.xpose.msra.mxu0 %v140
    %174 = vmatprep.subr.mxu0 0.0
    %175 = vmatpush2.xpose.msra.mxu0 0.0
    %176 = vmatprep.subr.mxu0 0.0
    %177 = vmatpush2.xpose.msra.mxu0 0.0
    %178 = vmatprep.subr.mxu0 0.0
    %179 = vmatpush2.xpose.msra.mxu0 0.0
    %180 = vmatprep.subr.mxu0 0.0
    %181 = vmatpush2.xpose.msra.mxu0 0.0
    %182 = vmatprep.subr.mxu0 0.0
    %183 = vmatpush2.xpose.msra.mxu0 0.0
    %184 = vmatprep.subr.mxu0 0.0
    %185 = vmatpush2.xpose.msra.mxu0 0.0
    %186 = vmatprep.subr.mxu0 0.0
    %187 = vmatpush2.xpose.msra.mxu0 0.0
    %188 = vmatprep.subr.mxu0 0.0
    %189 = vmatpush2.xpose.msra.mxu0 0.0
    %190 = vmatprep.subr.mxu0 0.0
    %191 = vmatpush2.xpose.msra.mxu0 0.0
    %192 = vmatprep.subr.mxu0 0.0
    %193 = vmatpush2.xpose.msra.mxu0 0.0
    %194 = vmatprep.subr.mxu0 0.0
    %195 = vmatpush2.xpose.msra.mxu0 0.0
    %196 = vmatprep.subr.mxu0 0.0
    %197 = vmatpush2.xpose.msra.mxu0 0.0
    %198 = vmatprep.subr.mxu0 0.0
    %199 = vmatpush2.xpose.msra.mxu0 0.0
    %200 = vmatprep.subr.mxu0 0.0
    %201 = vmatpush2.xpose.msra.mxu0 0.0
    %202 = vmatprep.subr.mxu0 0.0
    %203 = vmatpush2.xpose.msra.mxu0 0.0
    %204 = vmatprep.subr.mxu0 0.0
    %205 = vmatpush2.xpose.msra.mxu0 0.0
    %206 = vmatprep.mubr.f32.mxu0 0.0
    %207 = vmatmul.mubr.f32.gmra.mxu0 %v140
    %v208 = vpop.f32.mrf.mxu0
    %v209 = vadd.f32 0.0, %v208
    %v210 = vpop.f32.mrf.mxu0
    %211 = vdwg.mxu0
    %v213 = vsel %vm65, %v51, 0
    %215 = vmatprep.subr.mxu0 0.0
    %216 = vmatpush1.xpose.msra.mxu0 0.0
    %217 = vmatprep.subr.mxu0 0.0
    %218 = vmatpush1.xpose.msra.mxu0 0.0
    %219 = vmatprep.subr.mxu0 0.0
    %220 = vmatpush1.xpose.msra.mxu0 0.0
    %221 = vmatprep.subr.mxu0 0.0
    %222 = vmatpush1.xpose.msra.mxu0 0.0
    %223 = vmatprep.subr.mxu0 0.0
    %224 = vmatpush1.xpose.msra.mxu0 0.0
    %225 = vmatprep.subr.mxu0 0.0
    %226 = vmatpush1.xpose.msra.mxu0 0.0
    %227 = vmatprep.subr.mxu0 0.0
    %228 = vmatpush1.xpose.msra.mxu0 0.0
    %229 = vmatprep.subr.mxu0 0.0
    %230 = vmatpush1.xpose.msra.mxu0 0.0
    %231 = vmatprep.subr.mxu0 0.0
    %232 = vmatpush1.xpose.msra.mxu0 0.0
    %233 = vmatprep.subr.mxu0 0.0
    %234 = vmatpush1.xpose.msra.mxu0 0.0
    %235 = vmatprep.subr.mxu0 0.0
    %236 = vmatpush1.xpose.msra.mxu0 0.0
    %237 = vmatprep.subr.mxu0 0.0
    %238 = vmatpush1.xpose.msra.mxu0 0.0
    %239 = vmatprep.subr.mxu0 0.0
    %240 = vmatpush1.xpose.msra.mxu0 0.0
    %241 = vmatprep.subr.mxu0 0.0
    %242 = vmatpush1.xpose.msra.mxu0 0.0
    %243 = vmatprep.subr.mxu0 0.0
    %244 = vmatpush1.xpose.msra.mxu0 0.0
    %245 = vmatprep.subr.mxu0 0.0
    %246 = vmatpush1.xpose.msra.mxu0 %v213
    %247 = vmatprep.subr.mxu0 0.0
    %248 = vmatpush2.xpose.msra.mxu0 0.0
    %249 = vmatprep.subr.mxu0 0.0
    %250 = vmatpush2.xpose.msra.mxu0 0.0
    %251 = vmatprep.subr.mxu0 0.0
    %252 = vmatpush2.xpose.msra.mxu0 0.0
    %253 = vmatprep.subr.mxu0 0.0
    %254 = vmatpush2.xpose.msra.mxu0 0.0
    %255 = vmatprep.subr.mxu0 0.0
    %256 = vmatpush2.xpose.msra.mxu0 0.0
    %257 = vmatprep.subr.mxu0 0.0
    %258 = vmatpush2.xpose.msra.mxu0 0.0
    %259 = vmatprep.subr.mxu0 0.0
    %260 = vmatpush2.xpose.msra.mxu0 0.0
    %261 = vmatprep.subr.mxu0 0.0
    %262 = vmatpush2.xpose.msra.mxu0 0.0
    %263 = vmatprep.subr.mxu0 0.0
    %264 = vmatpush2.xpose.msra.mxu0 0.0
    %265 = vmatprep.subr.mxu0 0.0
    %266 = vmatpush2.xpose.msra.mxu0 0.0
    %267 = vmatprep.subr.mxu0 0.0
    %268 = vmatpush2.xpose.msra.mxu0 0.0
    %269 = vmatprep.subr.mxu0 0.0
    %270 = vmatpush2.xpose.msra.mxu0 0.0
    %271 = vmatprep.subr.mxu0 0.0
    %272 = vmatpush2.xpose.msra.mxu0 0.0
    %273 = vmatprep.subr.mxu0 0.0
    %274 = vmatpush2.xpose.msra.mxu0 0.0
    %275 = vmatprep.subr.mxu0 0.0
    %276 = vmatpush2.xpose.msra.mxu0 0.0
    %277 = vmatprep.subr.mxu0 0.0
    %278 = vmatpush2.xpose.msra.mxu0 0.0
    %279 = vmatprep.mubr.f32.mxu0 0.0
    %280 = vmatmul.mubr.f32.gmra.mxu0 %v213
    %v281 = vpop.f32.mrf.mxu0
    %v282 = vadd.f32 0.0, %v281
    %v283 = vpop.f32.mrf.mxu0
    %284 = vdwg.mxu0
    %v286 = vsel %vm65, %v52, 0
    %288 = vmatprep.subr.mxu0 0.0
    %289 = vmatpush1.xpose.msra.mxu0 0.0
    %290 = vmatprep.subr.mxu0 0.0
    %291 = vmatpush1.xpose.msra.mxu0 0.0
    %292 = vmatprep.subr.mxu0 0.0
    %293 = vmatpush1.xpose.msra.mxu0 0.0
    %294 = vmatprep.subr.mxu0 0.0
    %295 = vmatpush1.xpose.msra.mxu0 0.0
    %296 = vmatprep.subr.mxu0 0.0
    %297 = vmatpush1.xpose.msra.mxu0 0.0
    %298 = vmatprep.subr.mxu0 0.0
    %299 = vmatpush1.xpose.msra.mxu0 0.0
    %300 = vmatprep.subr.mxu0 0.0
    %301 = vmatpush1.xpose.msra.mxu0 0.0
    %302 = vmatprep.subr.mxu0 0.0
    %303 = vmatpush1.xpose.msra.mxu0 0.0
    %304 = vmatprep.subr.mxu0 0.0
    %305 = vmatpush1.xpose.msra.mxu0 0.0
    %306 = vmatprep.subr.mxu0 0.0
    %307 = vmatpush1.xpose.msra.mxu0 0.0
    %308 = vmatprep.subr.mxu0 0.0
    %309 = vmatpush1.xpose.msra.mxu0 0.0
    %310 = vmatprep.subr.mxu0 0.0
    %311 = vmatpush1.xpose.msra.mxu0 0.0
    %312 = vmatprep.subr.mxu0 0.0
    %313 = vmatpush1.xpose.msra.mxu0 0.0
    %314 = vmatprep.subr.mxu0 0.0
    %315 = vmatpush1.xpose.msra.mxu0 0.0
    %316 = vmatprep.subr.mxu0 0.0
    %317 = vmatpush1.xpose.msra.mxu0 0.0
    %318 = vmatprep.subr.mxu0 0.0
    %319 = vmatpush1.xpose.msra.mxu0 %v286
    %320 = vmatprep.subr.mxu0 0.0
    %321 = vmatpush2.xpose.msra.mxu0 0.0
    %322 = vmatprep.subr.mxu0 0.0
    %323 = vmatpush2.xpose.msra.mxu0 0.0
    %324 = vmatprep.subr.mxu0 0.0
    %325 = vmatpush2.xpose.msra.mxu0 0.0
    %326 = vmatprep.subr.mxu0 0.0
    %327 = vmatpush2.xpose.msra.mxu0 0.0
    %328 = vmatprep.subr.mxu0 0.0
    %329 = vmatpush2.xpose.msra.mxu0 0.0
    %330 = vmatprep.subr.mxu0 0.0
    %331 = vmatpush2.xpose.msra.mxu0 0.0
    %332 = vmatprep.subr.mxu0 0.0
    %333 = vmatpush2.xpose.msra.mxu0 0.0
    %334 = vmatprep.subr.mxu0 0.0
    %335 = vmatpush2.xpose.msra.mxu0 0.0
    %336 = vmatprep.subr.mxu0 0.0
    %337 = vmatpush2.xpose.msra.mxu0 0.0
    %338 = vmatprep.subr.mxu0 0.0
    %339 = vmatpush2.xpose.msra.mxu0 0.0
    %340 = vmatprep.subr.mxu0 0.0
    %341 = vmatpush2.xpose.msra.mxu0 0.0
    %342 = vmatprep.subr.mxu0 0.0
    %343 = vmatpush2.xpose.msra.mxu0 0.0
    %344 = vmatprep.subr.mxu0 0.0
    %345 = vmatpush2.xpose.msra.mxu0 0.0
    %346 = vmatprep.subr.mxu0 0.0
    %347 = vmatpush2.xpose.msra.mxu0 0.0
    %348 = vmatprep.subr.mxu0 0.0
    %349 = vmatpush2.xpose.msra.mxu0 0.0
    %350 = vmatprep.subr.mxu0 0.0
    %351 = vmatpush2.xpose.msra.mxu0 0.0
    %352 = vmatprep.mubr.f32.mxu0 0.0
    %353 = vmatmul.mubr.f32.gmra.mxu0 %v286
    %v354 = vpop.f32.mrf.mxu0
    %v355 = vadd.f32 0.0, %v354
    %v356 = vpop.f32.mrf.mxu0
    %357 = vdwg.mxu0
    %v359 = vsel %vm65, %v53, 0
    %361 = vmatprep.subr.mxu0 0.0
    %362 = vmatpush1.xpose.msra.mxu0 0.0
    %363 = vmatprep.subr.mxu0 0.0
    %364 = vmatpush1.xpose.msra.mxu0 0.0
    %365 = vmatprep.subr.mxu0 0.0
    %366 = vmatpush1.xpose.msra.mxu0 0.0
    %367 = vmatprep.subr.mxu0 0.0
    %368 = vmatpush1.xpose.msra.mxu0 0.0
    %369 = vmatprep.subr.mxu0 0.0
    %370 = vmatpush1.xpose.msra.mxu0 0.0
    %371 = vmatprep.subr.mxu0 0.0
    %372 = vmatpush1.xpose.msra.mxu0 0.0
    %373 = vmatprep.subr.mxu0 0.0
    %374 = vmatpush1.xpose.msra.mxu0 0.0
    %375 = vmatprep.subr.mxu0 0.0
    %376 = vmatpush1.xpose.msra.mxu0 0.0
    %377 = vmatprep.subr.mxu0 0.0
    %378 = vmatpush1.xpose.msra.mxu0 0.0
    %379 = vmatprep.subr.mxu0 0.0
    %380 = vmatpush1.xpose.msra.mxu0 0.0
    %381 = vmatprep.subr.mxu0 0.0
    %382 = vmatpush1.xpose.msra.mxu0 0.0
    %383 = vmatprep.subr.mxu0 0.0
    %384 = vmatpush1.xpose.msra.mxu0 0.0
    %385 = vmatprep.subr.mxu0 0.0
    %386 = vmatpush1.xpose.msra.mxu0 0.0
    %387 = vmatprep.subr.mxu0 0.0
    %388 = vmatpush1.xpose.msra.mxu0 0.0
    %389 = vmatprep.subr.mxu0 0.0
    %390 = vmatpush1.xpose.msra.mxu0 0.0
    %391 = vmatprep.subr.mxu0 0.0
    %392 = vmatpush1.xpose.msra.mxu0 %v359
    %393 = vmatprep.subr.mxu0 0.0
    %394 = vmatpush2.xpose.msra.mxu0 0.0
    %395 = vmatprep.subr.mxu0 0.0
    %396 = vmatpush2.xpose.msra.mxu0 0.0
    %397 = vmatprep.subr.mxu0 0.0
    %398 = vmatpush2.xpose.msra.mxu0 0.0
    %399 = vmatprep.subr.mxu0 0.0
    %400 = vmatpush2.xpose.msra.mxu0 0.0
    %401 = vmatprep.subr.mxu0 0.0
    %402 = vmatpush2.xpose.msra.mxu0 0.0
    %403 = vmatprep.subr.mxu0 0.0
    %404 = vmatpush2.xpose.msra.mxu0 0.0
    %405 = vmatprep.subr.mxu0 0.0
    %406 = vmatpush2.xpose.msra.mxu0 0.0
    %407 = vmatprep.subr.mxu0 0.0
    %408 = vmatpush2.xpose.msra.mxu0 0.0
    %409 = vmatprep.subr.mxu0 0.0
    %410 = vmatpush2.xpose.msra.mxu0 0.0
    %411 = vmatprep.subr.mxu0 0.0
    %412 = vmatpush2.xpose.msra.mxu0 0.0
    %413 = vmatprep.subr.mxu0 0.0
    %414 = vmatpush2.xpose.msra.mxu0 0.0
    %415 = vmatprep.subr.mxu0 0.0
    %416 = vmatpush2.xpose.msra.mxu0 0.0
    %417 = vmatprep.subr.mxu0 0.0
    %418 = vmatpush2.xpose.msra.mxu0 0.0
    %419 = vmatprep.subr.mxu0 0.0
    %420 = vmatpush2.xpose.msra.mxu0 0.0
    %421 = vmatprep.subr.mxu0 0.0
    %422 = vmatpush2.xpose.msra.mxu0 0.0
    %423 = vmatprep.subr.mxu0 0.0
    %424 = vmatpush2.xpose.msra.mxu0 0.0
    %425 = vmatprep.mubr.f32.mxu0 0.0
    %426 = vmatmul.mubr.f32.gmra.mxu0 %v359
    %v427 = vpop.f32.mrf.mxu0
    %v428 = vadd.f32 0.0, %v427
    %v429 = vpop.f32.mrf.mxu0
    %430 = vdwg.mxu0
    %v432 = vsel %vm65, %v54, 0
    %434 = vmatprep.subr.mxu0 0.0
    %435 = vmatpush1.xpose.msra.mxu0 0.0
    %436 = vmatprep.subr.mxu0 0.0
    %437 = vmatpush1.xpose.msra.mxu0 0.0
    %438 = vmatprep.subr.mxu0 0.0
    %439 = vmatpush1.xpose.msra.mxu0 0.0
    %440 = vmatprep.subr.mxu0 0.0
    %441 = vmatpush1.xpose.msra.mxu0 0.0
    %442 = vmatprep.subr.mxu0 0.0
    %443 = vmatpush1.xpose.msra.mxu0 0.0
    %444 = vmatprep.subr.mxu0 0.0
    %445 = vmatpush1.xpose.msra.mxu0 0.0
    %446 = vmatprep.subr.mxu0 0.0
    %447 = vmatpush1.xpose.msra.mxu0 0.0
    %448 = vmatprep.subr.mxu0 0.0
    %449 = vmatpush1.xpose.msra.mxu0 0.0
    %450 = vmatprep.subr.mxu0 0.0
    %451 = vmatpush1.xpose.msra.mxu0 0.0
    %452 = vmatprep.subr.mxu0 0.0
    %453 = vmatpush1.xpose.msra.mxu0 0.0
    %454 = vmatprep.subr.mxu0 0.0
    %455 = vmatpush1.xpose.msra.mxu0 0.0
    %456 = vmatprep.subr.mxu0 0.0
    %457 = vmatpush1.xpose.msra.mxu0 0.0
    %458 = vmatprep.subr.mxu0 0.0
    %459 = vmatpush1.xpose.msra.mxu0 0.0
    %460 = vmatprep.subr.mxu0 0.0
    %461 = vmatpush1.xpose.msra.mxu0 0.0
    %462 = vmatprep.subr.mxu0 0.0
    %463 = vmatpush1.xpose.msra.mxu0 0.0
    %464 = vmatprep.subr.mxu0 0.0
    %465 = vmatpush1.xpose.msra.mxu0 %v432
    %466 = vmatprep.subr.mxu0 0.0
    %467 = vmatpush2.xpose.msra.mxu0 0.0
    %468 = vmatprep.subr.mxu0 0.0
    %469 = vmatpush2.xpose.msra.mxu0 0.0
    %470 = vmatprep.subr.mxu0 0.0
    %471 = vmatpush2.xpose.msra.mxu0 0.0
    %472 = vmatprep.subr.mxu0 0.0
    %473 = vmatpush2.xpose.msra.mxu0 0.0
    %474 = vmatprep.subr.mxu0 0.0
    %475 = vmatpush2.xpose.msra.mxu0 0.0
    %476 = vmatprep.subr.mxu0 0.0
    %477 = vmatpush2.xpose.msra.mxu0 0.0
    %478 = vmatprep.subr.mxu0 0.0
    %479 = vmatpush2.xpose.msra.mxu0 0.0
    %480 = vmatprep.subr.mxu0 0.0
    %481 = vmatpush2.xpose.msra.mxu0 0.0
    %482 = vmatprep.subr.mxu0 0.0
    %483 = vmatpush2.xpose.msra.mxu0 0.0
    %484 = vmatprep.subr.mxu0 0.0
    %485 = vmatpush2.xpose.msra.mxu0 0.0
    %486 = vmatprep.subr.mxu0 0.0
    %487 = vmatpush2.xpose.msra.mxu0 0.0
    %488 = vmatprep.subr.mxu0 0.0
    %489 = vmatpush2.xpose.msra.mxu0 0.0
    %490 = vmatprep.subr.mxu0 0.0
    %491 = vmatpush2.xpose.msra.mxu0 0.0
    %492 = vmatprep.subr.mxu0 0.0
    %493 = vmatpush2.xpose.msra.mxu0 0.0
    %494 = vmatprep.subr.mxu0 0.0
    %495 = vmatpush2.xpose.msra.mxu0 0.0
    %496 = vmatprep.subr.mxu0 0.0
    %497 = vmatpush2.xpose.msra.mxu0 0.0
    %498 = vmatprep.mubr.f32.mxu0 0.0
    %499 = vmatmul.mubr.f32.gmra.mxu0 %v432
    %v500 = vpop.f32.mrf.mxu0
    %v501 = vadd.f32 0.0, %v500
    %v502 = vpop.f32.mrf.mxu0
    %503 = vdwg.mxu0
    %v505 = vsel %vm65, %v62, 0
    %507 = vmatprep.subr.mxu0 0.0
    %508 = vmatpush1.xpose.msra.mxu0 0.0
    %509 = vmatprep.subr.mxu0 0.0
    %510 = vmatpush1.xpose.msra.mxu0 0.0
    %511 = vmatprep.subr.mxu0 0.0
    %512 = vmatpush1.xpose.msra.mxu0 0.0
    %513 = vmatprep.subr.mxu0 0.0
    %514 = vmatpush1.xpose.msra.mxu0 0.0
    %515 = vmatprep.subr.mxu0 0.0
    %516 = vmatpush1.xpose.msra.mxu0 0.0
    %517 = vmatprep.subr.mxu0 0.0
    %518 = vmatpush1.xpose.msra.mxu0 0.0
    %519 = vmatprep.subr.mxu0 0.0
    %520 = vmatpush1.xpose.msra.mxu0 0.0
    %521 = vmatprep.subr.mxu0 0.0
    %522 = vmatpush1.xpose.msra.mxu0 0.0
    %523 = vmatprep.subr.mxu0 0.0
    %524 = vmatpush1.xpose.msra.mxu0 0.0
    %525 = vmatprep.subr.mxu0 0.0
    %526 = vmatpush1.xpose.msra.mxu0 0.0
    %527 = vmatprep.subr.mxu0 0.0
    %528 = vmatpush1.xpose.msra.mxu0 0.0
    %529 = vmatprep.subr.mxu0 0.0
    %530 = vmatpush1.xpose.msra.mxu0 0.0
    %531 = vmatprep.subr.mxu0 0.0
    %532 = vmatpush1.xpose.msra.mxu0 0.0
    %533 = vmatprep.subr.mxu0 0.0
    %534 = vmatpush1.xpose.msra.mxu0 0.0
    %535 = vmatprep.subr.mxu0 0.0
    %536 = vmatpush1.xpose.msra.mxu0 0.0
    %537 = vmatprep.subr.mxu0 0.0
    %538 = vmatpush1.xpose.msra.mxu0 %v505
    %539 = vmatprep.subr.mxu0 0.0
    %540 = vmatpush2.xpose.msra.mxu0 0.0
    %541 = vmatprep.subr.mxu0 0.0
    %542 = vmatpush2.xpose.msra.mxu0 0.0
    %543 = vmatprep.subr.mxu0 0.0
    %544 = vmatpush2.xpose.msra.mxu0 0.0
    %545 = vmatprep.subr.mxu0 0.0
    %546 = vmatpush2.xpose.msra.mxu0 0.0
    %547 = vmatprep.subr.mxu0 0.0
    %548 = vmatpush2.xpose.msra.mxu0 0.0
    %549 = vmatprep.subr.mxu0 0.0
    %550 = vmatpush2.xpose.msra.mxu0 0.0
    %551 = vmatprep.subr.mxu0 0.0
    %552 = vmatpush2.xpose.msra.mxu0 0.0
    %553 = vmatprep.subr.mxu0 0.0
    %554 = vmatpush2.xpose.msra.mxu0 0.0
    %555 = vmatprep.subr.mxu0 0.0
    %556 = vmatpush2.xpose.msra.mxu0 0.0
    %557 = vmatprep.subr.mxu0 0.0
    %558 = vmatpush2.xpose.msra.mxu0 0.0
    %559 = vmatprep.subr.mxu0 0.0
    %560 = vmatpush2.xpose.msra.mxu0 0.0
    %561 = vmatprep.subr.mxu0 0.0
    %562 = vmatpush2.xpose.msra.mxu0 0.0
    %563 = vmatprep.subr.mxu0 0.0
    %564 = vmatpush2.xpose.msra.mxu0 0.0
    %565 = vmatprep.subr.mxu0 0.0
    %566 = vmatpush2.xpose.msra.mxu0 0.0
    %567 = vmatprep.subr.mxu0 0.0
    %568 = vmatpush2.xpose.msra.mxu0 0.0
    %569 = vmatprep.subr.mxu0 0.0
    %570 = vmatpush2.xpose.msra.mxu0 0.0
    %571 = vmatprep.mubr.f32.mxu0 0.0
    %572 = vmatmul.mubr.f32.gmra.mxu0 %v505
    %v573 = vpop.f32.mrf.mxu0
    %v574 = vadd.f32 0.0, %v573
    %v575 = vpop.f32.mrf.mxu0
    %576 = vdwg.mxu0
    %v578 = vsel %vm65, %v63, 0
    %580 = vmatprep.subr.mxu0 0.0
    %581 = vmatpush1.xpose.msra.mxu0 0.0
    %582 = vmatprep.subr.mxu0 0.0
    %583 = vmatpush1.xpose.msra.mxu0 0.0
    %584 = vmatprep.subr.mxu0 0.0
    %585 = vmatpush1.xpose.msra.mxu0 0.0
    %586 = vmatprep.subr.mxu0 0.0
    %587 = vmatpush1.xpose.msra.mxu0 0.0
    %588 = vmatprep.subr.mxu0 0.0
    %589 = vmatpush1.xpose.msra.mxu0 0.0
    %590 = vmatprep.subr.mxu0 0.0
    %591 = vmatpush1.xpose.msra.mxu0 0.0
    %592 = vmatprep.subr.mxu0 0.0
    %593 = vmatpush1.xpose.msra.mxu0 0.0
    %594 = vmatprep.subr.mxu0 0.0
    %595 = vmatpush1.xpose.msra.mxu0 0.0
    %596 = vmatprep.subr.mxu0 0.0
    %597 = vmatpush1.xpose.msra.mxu0 0.0
    %598 = vmatprep.subr.mxu0 0.0
    %599 = vmatpush1.xpose.msra.mxu0 0.0
    %600 = vmatprep.subr.mxu0 0.0
    %601 = vmatpush1.xpose.msra.mxu0 0.0
    %602 = vmatprep.subr.mxu0 0.0
    %603 = vmatpush1.xpose.msra.mxu0 0.0
    %604 = vmatprep.subr.mxu0 0.0
    %605 = vmatpush1.xpose.msra.mxu0 0.0
    %606 = vmatprep.subr.mxu0 0.0
    %607 = vmatpush1.xpose.msra.mxu0 0.0
    %608 = vmatprep.subr.mxu0 0.0
    %609 = vmatpush1.xpose.msra.mxu0 0.0
    %610 = vmatprep.subr.mxu0 0.0
    %611 = vmatpush1.xpose.msra.mxu0 %v578
    %612 = vmatprep.subr.mxu0 0.0
    %613 = vmatpush2.xpose.msra.mxu0 0.0
    %614 = vmatprep.subr.mxu0 0.0
    %615 = vmatpush2.xpose.msra.mxu0 0.0
    %616 = vmatprep.subr.mxu0 0.0
    %617 = vmatpush2.xpose.msra.mxu0 0.0
    %618 = vmatprep.subr.mxu0 0.0
    %619 = vmatpush2.xpose.msra.mxu0 0.0
    %620 = vmatprep.subr.mxu0 0.0
    %621 = vmatpush2.xpose.msra.mxu0 0.0
    %622 = vmatprep.subr.mxu0 0.0
    %623 = vmatpush2.xpose.msra.mxu0 0.0
    %624 = vmatprep.subr.mxu0 0.0
    %625 = vmatpush2.xpose.msra.mxu0 0.0
    %626 = vmatprep.subr.mxu0 0.0
    %627 = vmatpush2.xpose.msra.mxu0 0.0
    %628 = vmatprep.subr.mxu0 0.0
    %629 = vmatpush2.xpose.msra.mxu0 0.0
    %630 = vmatprep.subr.mxu0 0.0
    %631 = vmatpush2.xpose.msra.mxu0 0.0
    %632 = vmatprep.subr.mxu0 0.0
    %633 = vmatpush2.xpose.msra.mxu0 0.0
    %634 = vmatprep.subr.mxu0 0.0
    %635 = vmatpush2.xpose.msra.mxu0 0.0
    %636 = vmatprep.subr.mxu0 0.0
    %637 = vmatpush2.xpose.msra.mxu0 0.0
    %638 = vmatprep.subr.mxu0 0.0
    %639 = vmatpush2.xpose.msra.mxu0 0.0
    %640 = vmatprep.subr.mxu0 0.0
    %641 = vmatpush2.xpose.msra.mxu0 0.0
    %642 = vmatprep.subr.mxu0 0.0
    %643 = vmatpush2.xpose.msra.mxu0 0.0
    %644 = vmatprep.mubr.f32.mxu0 0.0
    %645 = vmatmul.mubr.f32.gmra.mxu0 %v578
    %v646 = vpop.f32.mrf.mxu0
    %v647 = vadd.f32 0.0, %v646
    %v648 = vpop.f32.mrf.mxu0
    %649 = vdwg.mxu0
    %v651 = vsel %vm65, %v64, 0
    %653 = vmatprep.subr.mxu0 0.0
    %654 = vmatpush1.xpose.msra.mxu0 0.0
    %655 = vmatprep.subr.mxu0 0.0
    %656 = vmatpush1.xpose.msra.mxu0 0.0
    %657 = vmatprep.subr.mxu0 0.0
    %658 = vmatpush1.xpose.msra.mxu0 0.0
    %659 = vmatprep.subr.mxu0 0.0
    %660 = vmatpush1.xpose.msra.mxu0 0.0
    %661 = vmatprep.subr.mxu0 0.0
    %662 = vmatpush1.xpose.msra.mxu0 0.0
    %663 = vmatprep.subr.mxu0 0.0
    %664 = vmatpush1.xpose.msra.mxu0 0.0
    %665 = vmatprep.subr.mxu0 0.0
    %666 = vmatpush1.xpose.msra.mxu0 0.0
    %667 = vmatprep.subr.mxu0 0.0
    %668 = vmatpush1.xpose.msra.mxu0 0.0
    %669 = vmatprep.subr.mxu0 0.0
    %670 = vmatpush1.xpose.msra.mxu0 0.0
    %671 = vmatprep.subr.mxu0 0.0
    %672 = vmatpush1.xpose.msra.mxu0 0.0
    %673 = vmatprep.subr.mxu0 0.0
    %674 = vmatpush1.xpose.msra.mxu0 0.0
    %675 = vmatprep.subr.mxu0 0.0
    %676 = vmatpush1.xpose.msra.mxu0 0.0
    %677 = vmatprep.subr.mxu0 0.0
    %678 = vmatpush1.xpose.msra.mxu0 0.0
    %679 = vmatprep.subr.mxu0 0.0
    %680 = vmatpush1.xpose.msra.mxu0 0.0
    %681 = vmatprep.subr.mxu0 0.0
    %682 = vmatpush1.xpose.msra.mxu0 0.0
    %683 = vmatprep.subr.mxu0 0.0
    %684 = vmatpush1.xpose.msra.mxu0 %v651
    %685 = vmatprep.subr.mxu0 0.0
    %686 = vmatpush2.xpose.msra.mxu0 0.0
    %687 = vmatprep.subr.mxu0 0.0
    %688 = vmatpush2.xpose.msra.mxu0 0.0
    %689 = vmatprep.subr.mxu0 0.0
    %690 = vmatpush2.xpose.msra.mxu0 0.0
    %691 = vmatprep.subr.mxu0 0.0
    %692 = vmatpush2.xpose.msra.mxu0 0.0
    %693 = vmatprep.subr.mxu0 0.0
    %694 = vmatpush2.xpose.msra.mxu0 0.0
    %695 = vmatprep.subr.mxu0 0.0
    %696 = vmatpush2.xpose.msra.mxu0 0.0
    %697 = vmatprep.subr.mxu0 0.0
    %698 = vmatpush2.xpose.msra.mxu0 0.0
    %699 = vmatprep.subr.mxu0 0.0
    %700 = vmatpush2.xpose.msra.mxu0 0.0
    %701 = vmatprep.subr.mxu0 0.0
    %702 = vmatpush2.xpose.msra.mxu0 0.0
    %703 = vmatprep.subr.mxu0 0.0
    %704 = vmatpush2.xpose.msra.mxu0 0.0
    %705 = vmatprep.subr.mxu0 0.0
    %706 = vmatpush2.xpose.msra.mxu0 0.0
    %707 = vmatprep.subr.mxu0 0.0
    %708 = vmatpush2.xpose.msra.mxu0 0.0
    %709 = vmatprep.subr.mxu0 0.0
    %710 = vmatpush2.xpose.msra.mxu0 0.0
    %711 = vmatprep.subr.mxu0 0.0
    %712 = vmatpush2.xpose.msra.mxu0 0.0
    %713 = vmatprep.subr.mxu0 0.0
    %714 = vmatpush2.xpose.msra.mxu0 0.0
    %715 = vmatprep.subr.mxu0 0.0
    %716 = vmatpush2.xpose.msra.mxu0 0.0
    %717 = vmatprep.mubr.f32.mxu0 0.0
    %718 = vmatmul.mubr.f32.gmra.mxu0 %v651
    %v719 = vpop.f32.mrf.mxu0
    %v720 = vadd.f32 0.0, %v719
    %v721 = vpop.f32.mrf.mxu0
    %722 = vdwg.mxu0
    %v723 = vsub.f32 %v574, %v136
    %v724 = vsub.f32 %v647, %v209
    %v725 = vsub.f32 %v720, %v282
    %v726 = vsub.f32 %v723, %v355
    %v727 = vsub.f32 %v724, %v428
    %v728 = vsub.f32 %v725, %v501
    %v729 = vmul.f32 %v49, %v49
    %v730 = vmul.f32 %v50, %v50
    %v731 = vmul.f32 %v51, %v51
    %v732 = vsel %vm65, %v729, 0.0
    %733 = vadd.xlane.f32.xlu0 %v732
    %v734 = vpop.xlane.xlu0 %733
    %v735 = vsel %vm65, %v730, 0.0
    %736 = vadd.xlane.f32.xlu0 %v735
    %v737 = vpop.xlane.xlu0 %736
    %v738 = vsel %vm65, %v731, 0.0
    %739 = vadd.xlane.f32.xlu0 %v738
    %v740 = vpop.xlane.xlu0 %739
    %v741 = vmul.f32 %v49, %v52
    %v742 = vmul.f32 %v50, %v53
    %v743 = vmul.f32 %v51, %v54
    %v744 = vsel %vm65, %v741, 0.0
    %745 = vadd.xlane.f32.xlu0 %v744
    %v746 = vpop.xlane.xlu0 %745
    %v747 = vsel %vm65, %v742, 0.0
    %748 = vadd.xlane.f32.xlu0 %v747
    %v749 = vpop.xlane.xlu0 %748
    %v750 = vsel %vm65, %v743, 0.0
    %751 = vadd.xlane.f32.xlu0 %v750
    %v752 = vpop.xlane.xlu0 %751
    %v756 = vlaneseq
    %v757 = vand.u32 %v756, 127
    %v758 = vlaneseq
    %v759 = vshrl.u32 %v758, 7
    %v760 = vsub.s32 %v757, %v759
    %v761 = vrot.slane %v734, %v760
    %v762 = vlaneseq
    %v763 = vshrl.u32 %v762, 7
    %v764 = vsub.s32 %v757, %v763
    %v765 = vrot.slane %v737, %v764
    %v766 = vlaneseq
    %v767 = vshrl.u32 %v766, 7
    %v768 = vsub.s32 %v757, %v767
    %v769 = vrot.slane %v740, %v768
    %vm770 = vcmask 1042434
    %v771 = vsel %vm770, %v761, %v761
    %vm772 = vcmask 1043459
    %v773 = vsel %vm772, %v761, %v771
    %vm774 = vcmask 1044484
    %v775 = vsel %vm774, %v761, %v773
    %vm776 = vcmask 1045509
    %v777 = vsel %vm776, %v761, %v775
    %vm778 = vcmask 1046534
    %v779 = vsel %vm778, %v761, %v777
    %vm780 = vcmask 1047559
    %v781 = vsel %vm780, %v761, %v779
    %v782 = vsel %vm770, %v765, %v765
    %v783 = vsel %vm772, %v765, %v782
    %v784 = vsel %vm774, %v765, %v783
    %v785 = vsel %vm776, %v765, %v784
    %v786 = vsel %vm778, %v765, %v785
    %v787 = vsel %vm780, %v765, %v786
    %v788 = vsel %vm770, %v769, %v769
    %v789 = vsel %vm772, %v769, %v788
    %v790 = vsel %vm774, %v769, %v789
    %v791 = vsel %vm776, %v769, %v790
    %v792 = vsel %vm778, %v769, %v791
    %v793 = vsel %vm780, %v769, %v792
    %v797 = vadd.f32 %v734, %v781
    %v798 = vadd.f32 %v737, %v787
    %v799 = vadd.f32 %v740, %v793
    %v800 = vmul.f32 %v136, 2.0
    %v801 = vmul.f32 %v209, 2.0
    %v802 = vmul.f32 %v282, 2.0
    %v803 = vsub.f32 %v797, %v800
    %v804 = vsub.f32 %v798, %v801
    %v805 = vsub.f32 %v799, %v802
    %v806 = vmax.f32 %v803, 0.0
    %v807 = vmax.f32 %v804, 0.0
    %v808 = vmax.f32 %v805, 0.0
    %v809 = vsub.f32 0.0, %v806
    %v810 = vsub.f32 0.0, %v807
    %v811 = vsub.f32 0.0, %v808
    %v812 = vstv %s60
    %v813 = vmul.f32 %v809, %v812
    %v814 = vmul.f32 %v810, %v812
    %v815 = vmul.f32 %v811, %v812
    %v816 = vmul.f32 %v813, 1.442695
    %v817 = vpow.pop %v816
    %v818 = vmul.f32 %v814, 1.442695
    %v819 = vpow.pop %v818
    %v820 = vmul.f32 %v815, 1.442695
    %v821 = vpow.pop %v820
    %v822 = vstv %s45
    %v823 = vmul.f32 %v822, %v817
    %v824 = vmul.f32 %v822, %v819
    %v825 = vmul.f32 %v822, %v821
    %s826 = smul.f32 %s60, 16.0
    %v827 = vmul.f32 %v806, 4.0
    %v828 = vmul.f32 %v807, 4.0
    %v829 = vmul.f32 %v808, 4.0
    %s830 = smul.f32 %s60, %s60
    %v831 = vstv %s830
    %v832 = vmul.f32 %v827, %v831
    %v833 = vmul.f32 %v828, %v831
    %v834 = vmul.f32 %v829, %v831
    %v835 = vstv %s826
    %v836 = vsub.f32 %v835, %v832
    %v837 = vsub.f32 %v835, %v833
    %v838 = vsub.f32 %v835, %v834
    %v842 = vlaneseq
    %v843 = vshrl.u32 %v842, 7
    %v844 = vsub.s32 %v757, %v843
    %v845 = vrot.slane %v746, %v844
    %v846 = vlaneseq
    %v847 = vshrl.u32 %v846, 7
    %v848 = vsub.s32 %v757, %v847
    %v849 = vrot.slane %v749, %v848
    %v850 = vlaneseq
    %v851 = vshrl.u32 %v850, 7
    %v852 = vsub.s32 %v757, %v851
    %v853 = vrot.slane %v752, %v852
    %v854 = vsel %vm770, %v845, %v845
    %v855 = vsel %vm772, %v845, %v854
    %v856 = vsel %vm774, %v845, %v855
    %v857 = vsel %vm776, %v845, %v856
    %v858 = vsel %vm778, %v845, %v857
    %v859 = vsel %vm780, %v845, %v858
    %v860 = vsel %vm770, %v849, %v849
    %v861 = vsel %vm772, %v849, %v860
    %v862 = vsel %vm774, %v849, %v861
    %v863 = vsel %vm776, %v849, %v862
    %v864 = vsel %vm778, %v849, %v863
    %v865 = vsel %vm780, %v849, %v864
    %v866 = vsel %vm770, %v853, %v853
    %v867 = vsel %vm772, %v853, %v866
    %v868 = vsel %vm774, %v853, %v867
    %v869 = vsel %vm776, %v853, %v868
    %v870 = vsel %vm778, %v853, %v869
    %v871 = vsel %vm780, %v853, %v870
    %v875 = vadd.f32 %v746, %v859
    %v876 = vadd.f32 %v749, %v865
    %v877 = vadd.f32 %v752, %v871
    %v878 = vsub.f32 %v875, %v726
    %v879 = vsub.f32 %v876, %v727
    %v880 = vsub.f32 %v877, %v728
    %v881 = vstv %s61
    %v882 = vmul.f32 %v881, %v878
    %v883 = vmul.f32 %v881, %v879
    %v884 = vmul.f32 %v881, %v880
    %v885 = vadd.f32 %v836, %v882
    %v886 = vadd.f32 %v837, %v883
    %v887 = vadd.f32 %v838, %v884
    %v888 = vadd.f32 %v885, %v355
    %v889 = vadd.f32 %v886, %v428
    %v890 = vadd.f32 %v887, %v501
    %v891 = vmul.f32 %v823, %v888
    %v892 = vmul.f32 %v824, %v889
    %v893 = vmul.f32 %v825, %v890
    %v894 = vstv %s47
    %v895 = vadd.f32 %v891, %v894
    %v896 = vadd.f32 %v892, %v894
    %v897 = vadd.f32 %v893, %v894
    %v898 = vlaneseq
    %v899 = vshrl.u32 %v898, 7
    %vm900 = vcmp.eq.s32.totalorder %v899, %v757
    %v901 = vstv %s48
    %v902 = vadd.f32 %v895, %v901
    %v903 = vadd.f32 %v896, %v901
    %v904 = vadd.f32 %v897, %v901
    %v905 = vsel %vm900, %v902, %v895
    %v906 = vsel %vm900, %v903, %v896
    %v907 = vsel %vm900, %v904, %v897
    %v908 = vrcp.pop %v905
    %v909 = vmul.f32 1.0, %v908
    %v910 = vrcp.pop %v906
    %v911 = vmul.f32 1.0, %v910
    %v912 = vrcp.pop %v907
    %v913 = vmul.f32 1.0, %v912
    %v914 = vmul.f32 %v55, %v55
    %v915 = vmul.f32 %v56, %v56
    %v916 = vmul.f32 %v57, %v57
    %v917 = vmul.f32 %v914, %v909
    %v918 = vmul.f32 %v915, %v911
    %v919 = vmul.f32 %v916, %v913
    %v920 = vadd.f32 %v917, 0.0
    %v921 = vadd.f32 %v918, 0.0
    %v922 = vadd.f32 %v919, 0.0
    %v923 = vlog2.pop %v905
    %v924 = vmul.f32 %v923, 0.6931472
    %v925 = vlog2.pop %v906
    %v926 = vmul.f32 %v925, 0.6931472
    %v927 = vlog2.pop %v907
    %v928 = vmul.f32 %v927, 0.6931472
    %v929 = vadd.f32 %v924, 0.0
    %v930 = vadd.f32 %v926, 0.0
    %v931 = vadd.f32 %v928, 0.0
    %vm932 = vcmp.gt.s32.totalorder %v899, 0
    %v933 = vlaneseq
    %v934 = vshrl.u32 %v933, 7
    %v935 = vsub.s32 0, %v934
    %v936 = vrot.slane %v909, %v935
    %v937 = vlaneseq
    %v938 = vshrl.u32 %v937, 7
    %v939 = vsub.s32 0, %v938
    %v940 = vrot.slane %v911, %v939
    %v941 = vlaneseq
    %v942 = vshrl.u32 %v941, 7
    %v943 = vsub.s32 0, %v942
    %v944 = vrot.slane %v913, %v943
    %v945 = vmul.f32 %v905, %v936
    %v946 = vmul.f32 %v906, %v940
    %v947 = vmul.f32 %v907, %v944
    %v948 = vsel %vm932, %v945, 0.0
    %v949 = vsel %vm932, %v946, 0.0
    %v950 = vsel %vm932, %v947, 0.0
    %952 = vset.pattern.permute.xlu0 0
    %953 = vperm.xlu0 %952, %v948
    %v954 = vpop.permute.xlu0 %953
    %957 = vset.pattern.permute.xlu0 0
    %958 = vperm.xlu0 %957, %v949
    %v959 = vpop.permute.xlu0 %958
    %962 = vset.pattern.permute.xlu0 0
    %963 = vperm.xlu0 %962, %v950
    %v964 = vpop.permute.xlu0 %963
    %v966 = vlaneseq
    %v967 = vshrl.u32 %v966, 7
    %v968 = vsub.s32 0, %v967
    %v969 = vrot.slane %v905, %v968
    %v970 = vlaneseq
    %v971 = vshrl.u32 %v970, 7
    %v972 = vsub.s32 0, %v971
    %v973 = vrot.slane %v906, %v972
    %v974 = vlaneseq
    %v975 = vshrl.u32 %v974, 7
    %v976 = vsub.s32 0, %v975
    %v977 = vrot.slane %v907, %v976
    %v978 = vmul.f32 %v954, %v969
    %v979 = vmul.f32 %v959, %v973
    %v980 = vmul.f32 %v964, %v977
    %v981 = vsub.f32 %v905, %v978
    %v982 = vsub.f32 %v906, %v979
    %v983 = vsub.f32 %v907, %v980
    %v984 = vlaneseq
    %v985 = vshrl.u32 %v984, 7
    %v986 = vsub.s32 0, %v985
    %v987 = vrot.slane %v55, %v986
    %v988 = vlaneseq
    %v989 = vshrl.u32 %v988, 7
    %v990 = vsub.s32 0, %v989
    %v991 = vrot.slane %v56, %v990
    %v992 = vlaneseq
    %v993 = vshrl.u32 %v992, 7
    %v994 = vsub.s32 0, %v993
    %v995 = vrot.slane %v57, %v994
    %v996 = vmul.f32 %v948, %v987
    %v997 = vmul.f32 %v949, %v991
    %v998 = vmul.f32 %v950, %v995
    %v999 = vsub.f32 %v55, %v996
    %v1000 = vsub.f32 %v56, %v997
    %v1001 = vsub.f32 %v57, %v998
    %v1002 = vrcp.pop %v981
    %v1003 = vmul.f32 1.0, %v1002
    %v1004 = vrcp.pop %v982
    %v1005 = vmul.f32 1.0, %v1004
    %v1006 = vrcp.pop %v983
    %v1007 = vmul.f32 1.0, %v1006
    %v1008 = vmul.f32 %v999, %v999
    %v1009 = vmul.f32 %v1000, %v1000
    %v1010 = vmul.f32 %v1001, %v1001
    %1014 = vrot.lane.b32.xlu0 %v1003, 127
    %v1015 = vpop.permute.xlu0 %1014
    %1016 = vrot.lane.b32.xlu0 %v1005, 127
    %v1017 = vpop.permute.xlu0 %1016
    %1018 = vrot.lane.b32.xlu0 %v1007, 127
    %v1019 = vpop.permute.xlu0 %1018
    %v1023 = vmul.f32 %v1008, %v1015
    %v1024 = vmul.f32 %v1009, %v1017
    %v1025 = vmul.f32 %v1010, %v1019
    %v1029 = vrot.slane %v1023, 1
    %v1030 = vrot.slane %v1024, 1
    %v1031 = vrot.slane %v1025, 1
    %v1035 = vadd.f32 %v920, %v1029
    %v1036 = vadd.f32 %v921, %v1030
    %v1037 = vadd.f32 %v922, %v1031
    %v1038 = vlog2.pop %v981
    %v1039 = vmul.f32 %v1038, 0.6931472
    %v1040 = vlog2.pop %v982
    %v1041 = vmul.f32 %v1040, 0.6931472
    %v1042 = vlog2.pop %v983
    %v1043 = vmul.f32 %v1042, 0.6931472
    %v1047 = vrot.slane %v1039, 1
    %v1048 = vrot.slane %v1041, 1
    %v1049 = vrot.slane %v1043, 1
    %1050 = vrot.lane.b32.xlu0 %v1047, 127
    %v1051 = vpop.permute.xlu0 %1050
    %1052 = vrot.lane.b32.xlu0 %v1048, 127
    %v1053 = vpop.permute.xlu0 %1052
    %1054 = vrot.lane.b32.xlu0 %v1049, 127
    %v1055 = vpop.permute.xlu0 %1054
    %v1059 = vadd.f32 %v929, %v1051
    %v1060 = vadd.f32 %v930, %v1053
    %v1061 = vadd.f32 %v931, %v1055
    %vm1062 = vcmp.gt.s32.totalorder %v899, 1
    %v1063 = vlaneseq
    %v1064 = vshrl.u32 %v1063, 7
    %v1065 = vsub.s32 1, %v1064
    %v1066 = vrot.slane %v1003, %v1065
    %v1067 = vlaneseq
    %v1068 = vshrl.u32 %v1067, 7
    %v1069 = vsub.s32 1, %v1068
    %v1070 = vrot.slane %v1005, %v1069
    %v1071 = vlaneseq
    %v1072 = vshrl.u32 %v1071, 7
    %v1073 = vsub.s32 1, %v1072
    %v1074 = vrot.slane %v1007, %v1073
    %v1075 = vmul.f32 %v981, %v1066
    %v1076 = vmul.f32 %v982, %v1070
    %v1077 = vmul.f32 %v983, %v1074
    %v1078 = vsel %vm1062, %v1075, 0.0
    %v1079 = vsel %vm1062, %v1076, 0.0
    %v1080 = vsel %vm1062, %v1077, 0.0
    %1082 = vset.pattern.permute.xlu0 1
    %1083 = vperm.xlu0 %1082, %v1078
    %v1084 = vpop.permute.xlu0 %1083
    %1087 = vset.pattern.permute.xlu0 1
    %1088 = vperm.xlu0 %1087, %v1079
    %v1089 = vpop.permute.xlu0 %1088
    %1092 = vset.pattern.permute.xlu0 1
    %1093 = vperm.xlu0 %1092, %v1080
    %v1094 = vpop.permute.xlu0 %1093
    %v1096 = vlaneseq
    %v1097 = vshrl.u32 %v1096, 7
    %v1098 = vsub.s32 1, %v1097
    %v1099 = vrot.slane %v981, %v1098
    %v1100 = vlaneseq
    %v1101 = vshrl.u32 %v1100, 7
    %v1102 = vsub.s32 1, %v1101
    %v1103 = vrot.slane %v982, %v1102
    %v1104 = vlaneseq
    %v1105 = vshrl.u32 %v1104, 7
    %v1106 = vsub.s32 1, %v1105
    %v1107 = vrot.slane %v983, %v1106
    %v1108 = vmul.f32 %v1084, %v1099
    %v1109 = vmul.f32 %v1089, %v1103
    %v1110 = vmul.f32 %v1094, %v1107
    %v1111 = vsub.f32 %v981, %v1108
    %v1112 = vsub.f32 %v982, %v1109
    %v1113 = vsub.f32 %v983, %v1110
    %v1114 = vlaneseq
    %v1115 = vshrl.u32 %v1114, 7
    %v1116 = vsub.s32 1, %v1115
    %v1117 = vrot.slane %v999, %v1116
    %v1118 = vlaneseq
    %v1119 = vshrl.u32 %v1118, 7
    %v1120 = vsub.s32 1, %v1119
    %v1121 = vrot.slane %v1000, %v1120
    %v1122 = vlaneseq
    %v1123 = vshrl.u32 %v1122, 7
    %v1124 = vsub.s32 1, %v1123
    %v1125 = vrot.slane %v1001, %v1124
    %1129 = vrot.lane.b32.xlu0 %v1117, 1
    %v1130 = vpop.permute.xlu0 %1129
    %1131 = vrot.lane.b32.xlu0 %v1121, 1
    %v1132 = vpop.permute.xlu0 %1131
    %1133 = vrot.lane.b32.xlu0 %v1125, 1
    %v1134 = vpop.permute.xlu0 %1133
    %v1138 = vmul.f32 %v1078, %v1130
    %v1139 = vmul.f32 %v1079, %v1132
    %v1140 = vmul.f32 %v1080, %v1134
    %1144 = vrot.lane.b32.xlu0 %v1138, 127
    %v1145 = vpop.permute.xlu0 %1144
    %1146 = vrot.lane.b32.xlu0 %v1139, 127
    %v1147 = vpop.permute.xlu0 %1146
    %1148 = vrot.lane.b32.xlu0 %v1140, 127
    %v1149 = vpop.permute.xlu0 %1148
    %v1153 = vsub.f32 %v999, %v1145
    %v1154 = vsub.f32 %v1000, %v1147
    %v1155 = vsub.f32 %v1001, %v1149
    %v1156 = vrcp.pop %v1111
    %v1157 = vmul.f32 1.0, %v1156
    %v1158 = vrcp.pop %v1112
    %v1159 = vmul.f32 1.0, %v1158
    %v1160 = vrcp.pop %v1113
    %v1161 = vmul.f32 1.0, %v1160
    %v1162 = vmul.f32 %v1153, %v1153
    %v1163 = vmul.f32 %v1154, %v1154
    %v1164 = vmul.f32 %v1155, %v1155
    %1168 = vrot.lane.b32.xlu0 %v1157, 126
    %v1169 = vpop.permute.xlu0 %1168
    %1170 = vrot.lane.b32.xlu0 %v1159, 126
    %v1171 = vpop.permute.xlu0 %1170
    %1172 = vrot.lane.b32.xlu0 %v1161, 126
    %v1173 = vpop.permute.xlu0 %1172
    %v1177 = vmul.f32 %v1162, %v1169
    %v1178 = vmul.f32 %v1163, %v1171
    %v1179 = vmul.f32 %v1164, %v1173
    %v1183 = vrot.slane %v1177, 2
    %v1184 = vrot.slane %v1178, 2
    %v1185 = vrot.slane %v1179, 2
    %v1189 = vadd.f32 %v1035, %v1183
    %v1190 = vadd.f32 %v1036, %v1184
    %v1191 = vadd.f32 %v1037, %v1185
    %v1192 = vlog2.pop %v1111
    %v1193 = vmul.f32 %v1192, 0.6931472
    %v1194 = vlog2.pop %v1112
    %v1195 = vmul.f32 %v1194, 0.6931472
    %v1196 = vlog2.pop %v1113
    %v1197 = vmul.f32 %v1196, 0.6931472
    %v1201 = vrot.slane %v1193, 2
    %v1202 = vrot.slane %v1195, 2
    %v1203 = vrot.slane %v1197, 2
    %1204 = vrot.lane.b32.xlu0 %v1201, 126
    %v1205 = vpop.permute.xlu0 %1204
    %1206 = vrot.lane.b32.xlu0 %v1202, 126
    %v1207 = vpop.permute.xlu0 %1206
    %1208 = vrot.lane.b32.xlu0 %v1203, 126
    %v1209 = vpop.permute.xlu0 %1208
    %v1213 = vadd.f32 %v1059, %v1205
    %v1214 = vadd.f32 %v1060, %v1207
    %v1215 = vadd.f32 %v1061, %v1209
    %vm1216 = vcmp.gt.s32.totalorder %v899, 2
    %v1217 = vlaneseq
    %v1218 = vshrl.u32 %v1217, 7
    %v1219 = vsub.s32 2, %v1218
    %v1220 = vrot.slane %v1157, %v1219
    %v1221 = vlaneseq
    %v1222 = vshrl.u32 %v1221, 7
    %v1223 = vsub.s32 2, %v1222
    %v1224 = vrot.slane %v1159, %v1223
    %v1225 = vlaneseq
    %v1226 = vshrl.u32 %v1225, 7
    %v1227 = vsub.s32 2, %v1226
    %v1228 = vrot.slane %v1161, %v1227
    %v1229 = vmul.f32 %v1111, %v1220
    %v1230 = vmul.f32 %v1112, %v1224
    %v1231 = vmul.f32 %v1113, %v1228
    %v1232 = vsel %vm1216, %v1229, 0.0
    %v1233 = vsel %vm1216, %v1230, 0.0
    %v1234 = vsel %vm1216, %v1231, 0.0
    %1236 = vset.pattern.permute.xlu0 2
    %1237 = vperm.xlu0 %1236, %v1232
    %v1238 = vpop.permute.xlu0 %1237
    %1241 = vset.pattern.permute.xlu0 2
    %1242 = vperm.xlu0 %1241, %v1233
    %v1243 = vpop.permute.xlu0 %1242
    %1246 = vset.pattern.permute.xlu0 2
    %1247 = vperm.xlu0 %1246, %v1234
    %v1248 = vpop.permute.xlu0 %1247
    %v1250 = vlaneseq
    %v1251 = vshrl.u32 %v1250, 7
    %v1252 = vsub.s32 2, %v1251
    %v1253 = vrot.slane %v1111, %v1252
    %v1254 = vlaneseq
    %v1255 = vshrl.u32 %v1254, 7
    %v1256 = vsub.s32 2, %v1255
    %v1257 = vrot.slane %v1112, %v1256
    %v1258 = vlaneseq
    %v1259 = vshrl.u32 %v1258, 7
    %v1260 = vsub.s32 2, %v1259
    %v1261 = vrot.slane %v1113, %v1260
    %v1262 = vmul.f32 %v1238, %v1253
    %v1263 = vmul.f32 %v1243, %v1257
    %v1264 = vmul.f32 %v1248, %v1261
    %v1265 = vsub.f32 %v1111, %v1262
    %v1266 = vsub.f32 %v1112, %v1263
    %v1267 = vsub.f32 %v1113, %v1264
    %v1268 = vlaneseq
    %v1269 = vshrl.u32 %v1268, 7
    %v1270 = vsub.s32 2, %v1269
    %v1271 = vrot.slane %v1153, %v1270
    %v1272 = vlaneseq
    %v1273 = vshrl.u32 %v1272, 7
    %v1274 = vsub.s32 2, %v1273
    %v1275 = vrot.slane %v1154, %v1274
    %v1276 = vlaneseq
    %v1277 = vshrl.u32 %v1276, 7
    %v1278 = vsub.s32 2, %v1277
    %v1279 = vrot.slane %v1155, %v1278
    %1283 = vrot.lane.b32.xlu0 %v1271, 2
    %v1284 = vpop.permute.xlu0 %1283
    %1285 = vrot.lane.b32.xlu0 %v1275, 2
    %v1286 = vpop.permute.xlu0 %1285
    %1287 = vrot.lane.b32.xlu0 %v1279, 2
    %v1288 = vpop.permute.xlu0 %1287
    %v1292 = vmul.f32 %v1232, %v1284
    %v1293 = vmul.f32 %v1233, %v1286
    %v1294 = vmul.f32 %v1234, %v1288
    %1298 = vrot.lane.b32.xlu0 %v1292, 126
    %v1299 = vpop.permute.xlu0 %1298
    %1300 = vrot.lane.b32.xlu0 %v1293, 126
    %v1301 = vpop.permute.xlu0 %1300
    %1302 = vrot.lane.b32.xlu0 %v1294, 126
    %v1303 = vpop.permute.xlu0 %1302
    %v1307 = vsub.f32 %v1153, %v1299
    %v1308 = vsub.f32 %v1154, %v1301
    %v1309 = vsub.f32 %v1155, %v1303
    %v1310 = vrcp.pop %v1265
    %v1311 = vmul.f32 1.0, %v1310
    %v1312 = vrcp.pop %v1266
    %v1313 = vmul.f32 1.0, %v1312
    %v1314 = vrcp.pop %v1267
    %v1315 = vmul.f32 1.0, %v1314
    %v1316 = vmul.f32 %v1307, %v1307
    %v1317 = vmul.f32 %v1308, %v1308
    %v1318 = vmul.f32 %v1309, %v1309
    %1322 = vrot.lane.b32.xlu0 %v1311, 125
    %v1323 = vpop.permute.xlu0 %1322
    %1324 = vrot.lane.b32.xlu0 %v1313, 125
    %v1325 = vpop.permute.xlu0 %1324
    %1326 = vrot.lane.b32.xlu0 %v1315, 125
    %v1327 = vpop.permute.xlu0 %1326
    %v1331 = vmul.f32 %v1316, %v1323
    %v1332 = vmul.f32 %v1317, %v1325
    %v1333 = vmul.f32 %v1318, %v1327
    %v1337 = vrot.slane %v1331, 3
    %v1338 = vrot.slane %v1332, 3
    %v1339 = vrot.slane %v1333, 3
    %v1343 = vadd.f32 %v1189, %v1337
    %v1344 = vadd.f32 %v1190, %v1338
    %v1345 = vadd.f32 %v1191, %v1339
    %v1346 = vlog2.pop %v1265
    %v1347 = vmul.f32 %v1346, 0.6931472
    %v1348 = vlog2.pop %v1266
    %v1349 = vmul.f32 %v1348, 0.6931472
    %v1350 = vlog2.pop %v1267
    %v1351 = vmul.f32 %v1350, 0.6931472
    %v1355 = vrot.slane %v1347, 3
    %v1356 = vrot.slane %v1349, 3
    %v1357 = vrot.slane %v1351, 3
    %1358 = vrot.lane.b32.xlu0 %v1355, 125
    %v1359 = vpop.permute.xlu0 %1358
    %1360 = vrot.lane.b32.xlu0 %v1356, 125
    %v1361 = vpop.permute.xlu0 %1360
    %1362 = vrot.lane.b32.xlu0 %v1357, 125
    %v1363 = vpop.permute.xlu0 %1362
    %v1367 = vadd.f32 %v1213, %v1359
    %v1368 = vadd.f32 %v1214, %v1361
    %v1369 = vadd.f32 %v1215, %v1363
    %vm1370 = vcmp.gt.s32.totalorder %v899, 3
    %v1371 = vlaneseq
    %v1372 = vshrl.u32 %v1371, 7
    %v1373 = vsub.s32 3, %v1372
    %v1374 = vrot.slane %v1311, %v1373
    %v1375 = vlaneseq
    %v1376 = vshrl.u32 %v1375, 7
    %v1377 = vsub.s32 3, %v1376
    %v1378 = vrot.slane %v1313, %v1377
    %v1379 = vlaneseq
    %v1380 = vshrl.u32 %v1379, 7
    %v1381 = vsub.s32 3, %v1380
    %v1382 = vrot.slane %v1315, %v1381
    %v1383 = vmul.f32 %v1265, %v1374
    %v1384 = vmul.f32 %v1266, %v1378
    %v1385 = vmul.f32 %v1267, %v1382
    %v1386 = vsel %vm1370, %v1383, 0.0
    %v1387 = vsel %vm1370, %v1384, 0.0
    %v1388 = vsel %vm1370, %v1385, 0.0
    %1390 = vset.pattern.permute.xlu0 3
    %1391 = vperm.xlu0 %1390, %v1386
    %v1392 = vpop.permute.xlu0 %1391
    %1395 = vset.pattern.permute.xlu0 3
    %1396 = vperm.xlu0 %1395, %v1387
    %v1397 = vpop.permute.xlu0 %1396
    %1400 = vset.pattern.permute.xlu0 3
    %1401 = vperm.xlu0 %1400, %v1388
    %v1402 = vpop.permute.xlu0 %1401
    %v1404 = vlaneseq
    %v1405 = vshrl.u32 %v1404, 7
    %v1406 = vsub.s32 3, %v1405
    %v1407 = vrot.slane %v1265, %v1406
    %v1408 = vlaneseq
    %v1409 = vshrl.u32 %v1408, 7
    %v1410 = vsub.s32 3, %v1409
    %v1411 = vrot.slane %v1266, %v1410
    %v1412 = vlaneseq
    %v1413 = vshrl.u32 %v1412, 7
    %v1414 = vsub.s32 3, %v1413
    %v1415 = vrot.slane %v1267, %v1414
    %v1416 = vmul.f32 %v1392, %v1407
    %v1417 = vmul.f32 %v1397, %v1411
    %v1418 = vmul.f32 %v1402, %v1415
    %v1419 = vsub.f32 %v1265, %v1416
    %v1420 = vsub.f32 %v1266, %v1417
    %v1421 = vsub.f32 %v1267, %v1418
    %v1422 = vlaneseq
    %v1423 = vshrl.u32 %v1422, 7
    %v1424 = vsub.s32 3, %v1423
    %v1425 = vrot.slane %v1307, %v1424
    %v1426 = vlaneseq
    %v1427 = vshrl.u32 %v1426, 7
    %v1428 = vsub.s32 3, %v1427
    %v1429 = vrot.slane %v1308, %v1428
    %v1430 = vlaneseq
    %v1431 = vshrl.u32 %v1430, 7
    %v1432 = vsub.s32 3, %v1431
    %v1433 = vrot.slane %v1309, %v1432
    %1437 = vrot.lane.b32.xlu0 %v1425, 3
    %v1438 = vpop.permute.xlu0 %1437
    %1439 = vrot.lane.b32.xlu0 %v1429, 3
    %v1440 = vpop.permute.xlu0 %1439
    %1441 = vrot.lane.b32.xlu0 %v1433, 3
    %v1442 = vpop.permute.xlu0 %1441
    %v1446 = vmul.f32 %v1386, %v1438
    %v1447 = vmul.f32 %v1387, %v1440
    %v1448 = vmul.f32 %v1388, %v1442
    %1452 = vrot.lane.b32.xlu0 %v1446, 125
    %v1453 = vpop.permute.xlu0 %1452
    %1454 = vrot.lane.b32.xlu0 %v1447, 125
    %v1455 = vpop.permute.xlu0 %1454
    %1456 = vrot.lane.b32.xlu0 %v1448, 125
    %v1457 = vpop.permute.xlu0 %1456
    %v1461 = vsub.f32 %v1307, %v1453
    %v1462 = vsub.f32 %v1308, %v1455
    %v1463 = vsub.f32 %v1309, %v1457
    %v1464 = vrcp.pop %v1419
    %v1465 = vmul.f32 1.0, %v1464
    %v1466 = vrcp.pop %v1420
    %v1467 = vmul.f32 1.0, %v1466
    %v1468 = vrcp.pop %v1421
    %v1469 = vmul.f32 1.0, %v1468
    %v1470 = vmul.f32 %v1461, %v1461
    %v1471 = vmul.f32 %v1462, %v1462
    %v1472 = vmul.f32 %v1463, %v1463
    %1476 = vrot.lane.b32.xlu0 %v1465, 124
    %v1477 = vpop.permute.xlu0 %1476
    %1478 = vrot.lane.b32.xlu0 %v1467, 124
    %v1479 = vpop.permute.xlu0 %1478
    %1480 = vrot.lane.b32.xlu0 %v1469, 124
    %v1481 = vpop.permute.xlu0 %1480
    %v1485 = vmul.f32 %v1470, %v1477
    %v1486 = vmul.f32 %v1471, %v1479
    %v1487 = vmul.f32 %v1472, %v1481
    %v1491 = vrot.slane %v1485, 4
    %v1492 = vrot.slane %v1486, 4
    %v1493 = vrot.slane %v1487, 4
    %v1497 = vadd.f32 %v1343, %v1491
    %v1498 = vadd.f32 %v1344, %v1492
    %v1499 = vadd.f32 %v1345, %v1493
    %v1500 = vlog2.pop %v1419
    %v1501 = vmul.f32 %v1500, 0.6931472
    %v1502 = vlog2.pop %v1420
    %v1503 = vmul.f32 %v1502, 0.6931472
    %v1504 = vlog2.pop %v1421
    %v1505 = vmul.f32 %v1504, 0.6931472
    %v1509 = vrot.slane %v1501, 4
    %v1510 = vrot.slane %v1503, 4
    %v1511 = vrot.slane %v1505, 4
    %1512 = vrot.lane.b32.xlu0 %v1509, 124
    %v1513 = vpop.permute.xlu0 %1512
    %1514 = vrot.lane.b32.xlu0 %v1510, 124
    %v1515 = vpop.permute.xlu0 %1514
    %1516 = vrot.lane.b32.xlu0 %v1511, 124
    %v1517 = vpop.permute.xlu0 %1516
    %v1521 = vadd.f32 %v1367, %v1513
    %v1522 = vadd.f32 %v1368, %v1515
    %v1523 = vadd.f32 %v1369, %v1517
    %vm1524 = vcmp.gt.s32.totalorder %v899, 4
    %v1525 = vlaneseq
    %v1526 = vshrl.u32 %v1525, 7
    %v1527 = vsub.s32 4, %v1526
    %v1528 = vrot.slane %v1465, %v1527
    %v1529 = vlaneseq
    %v1530 = vshrl.u32 %v1529, 7
    %v1531 = vsub.s32 4, %v1530
    %v1532 = vrot.slane %v1467, %v1531
    %v1533 = vlaneseq
    %v1534 = vshrl.u32 %v1533, 7
    %v1535 = vsub.s32 4, %v1534
    %v1536 = vrot.slane %v1469, %v1535
    %v1537 = vmul.f32 %v1419, %v1528
    %v1538 = vmul.f32 %v1420, %v1532
    %v1539 = vmul.f32 %v1421, %v1536
    %v1540 = vsel %vm1524, %v1537, 0.0
    %v1541 = vsel %vm1524, %v1538, 0.0
    %v1542 = vsel %vm1524, %v1539, 0.0
    %1544 = vset.pattern.permute.xlu0 4
    %1545 = vperm.xlu0 %1544, %v1540
    %v1546 = vpop.permute.xlu0 %1545
    %1549 = vset.pattern.permute.xlu0 4
    %1550 = vperm.xlu0 %1549, %v1541
    %v1551 = vpop.permute.xlu0 %1550
    %1554 = vset.pattern.permute.xlu0 4
    %1555 = vperm.xlu0 %1554, %v1542
    %v1556 = vpop.permute.xlu0 %1555
    %v1558 = vlaneseq
    %v1559 = vshrl.u32 %v1558, 7
    %v1560 = vsub.s32 4, %v1559
    %v1561 = vrot.slane %v1419, %v1560
    %v1562 = vlaneseq
    %v1563 = vshrl.u32 %v1562, 7
    %v1564 = vsub.s32 4, %v1563
    %v1565 = vrot.slane %v1420, %v1564
    %v1566 = vlaneseq
    %v1567 = vshrl.u32 %v1566, 7
    %v1568 = vsub.s32 4, %v1567
    %v1569 = vrot.slane %v1421, %v1568
    %v1570 = vmul.f32 %v1546, %v1561
    %v1571 = vmul.f32 %v1551, %v1565
    %v1572 = vmul.f32 %v1556, %v1569
    %v1573 = vsub.f32 %v1419, %v1570
    %v1574 = vsub.f32 %v1420, %v1571
    %v1575 = vsub.f32 %v1421, %v1572
    %v1576 = vlaneseq
    %v1577 = vshrl.u32 %v1576, 7
    %v1578 = vsub.s32 4, %v1577
    %v1579 = vrot.slane %v1461, %v1578
    %v1580 = vlaneseq
    %v1581 = vshrl.u32 %v1580, 7
    %v1582 = vsub.s32 4, %v1581
    %v1583 = vrot.slane %v1462, %v1582
    %v1584 = vlaneseq
    %v1585 = vshrl.u32 %v1584, 7
    %v1586 = vsub.s32 4, %v1585
    %v1587 = vrot.slane %v1463, %v1586
    %1591 = vrot.lane.b32.xlu0 %v1579, 4
    %v1592 = vpop.permute.xlu0 %1591
    %1593 = vrot.lane.b32.xlu0 %v1583, 4
    %v1594 = vpop.permute.xlu0 %1593
    %1595 = vrot.lane.b32.xlu0 %v1587, 4
    %v1596 = vpop.permute.xlu0 %1595
    %v1600 = vmul.f32 %v1540, %v1592
    %v1601 = vmul.f32 %v1541, %v1594
    %v1602 = vmul.f32 %v1542, %v1596
    %1606 = vrot.lane.b32.xlu0 %v1600, 124
    %v1607 = vpop.permute.xlu0 %1606
    %1608 = vrot.lane.b32.xlu0 %v1601, 124
    %v1609 = vpop.permute.xlu0 %1608
    %1610 = vrot.lane.b32.xlu0 %v1602, 124
    %v1611 = vpop.permute.xlu0 %1610
    %v1615 = vsub.f32 %v1461, %v1607
    %v1616 = vsub.f32 %v1462, %v1609
    %v1617 = vsub.f32 %v1463, %v1611
    %v1618 = vrcp.pop %v1573
    %v1619 = vmul.f32 1.0, %v1618
    %v1620 = vrcp.pop %v1574
    %v1621 = vmul.f32 1.0, %v1620
    %v1622 = vrcp.pop %v1575
    %v1623 = vmul.f32 1.0, %v1622
    %v1624 = vmul.f32 %v1615, %v1615
    %v1625 = vmul.f32 %v1616, %v1616
    %v1626 = vmul.f32 %v1617, %v1617
    %1630 = vrot.lane.b32.xlu0 %v1619, 123
    %v1631 = vpop.permute.xlu0 %1630
    %1632 = vrot.lane.b32.xlu0 %v1621, 123
    %v1633 = vpop.permute.xlu0 %1632
    %1634 = vrot.lane.b32.xlu0 %v1623, 123
    %v1635 = vpop.permute.xlu0 %1634
    %v1639 = vmul.f32 %v1624, %v1631
    %v1640 = vmul.f32 %v1625, %v1633
    %v1641 = vmul.f32 %v1626, %v1635
    %v1645 = vrot.slane %v1639, 5
    %v1646 = vrot.slane %v1640, 5
    %v1647 = vrot.slane %v1641, 5
    %v1651 = vadd.f32 %v1497, %v1645
    %v1652 = vadd.f32 %v1498, %v1646
    %v1653 = vadd.f32 %v1499, %v1647
    %v1654 = vlog2.pop %v1573
    %v1655 = vmul.f32 %v1654, 0.6931472
    %v1656 = vlog2.pop %v1574
    %v1657 = vmul.f32 %v1656, 0.6931472
    %v1658 = vlog2.pop %v1575
    %v1659 = vmul.f32 %v1658, 0.6931472
    %v1663 = vrot.slane %v1655, 5
    %v1664 = vrot.slane %v1657, 5
    %v1665 = vrot.slane %v1659, 5
    %1666 = vrot.lane.b32.xlu0 %v1663, 123
    %v1667 = vpop.permute.xlu0 %1666
    %1668 = vrot.lane.b32.xlu0 %v1664, 123
    %v1669 = vpop.permute.xlu0 %1668
    %1670 = vrot.lane.b32.xlu0 %v1665, 123
    %v1671 = vpop.permute.xlu0 %1670
    %v1675 = vadd.f32 %v1521, %v1667
    %v1676 = vadd.f32 %v1522, %v1669
    %v1677 = vadd.f32 %v1523, %v1671
    %vm1678 = vcmp.gt.s32.totalorder %v899, 5
    %v1679 = vlaneseq
    %v1680 = vshrl.u32 %v1679, 7
    %v1681 = vsub.s32 5, %v1680
    %v1682 = vrot.slane %v1619, %v1681
    %v1683 = vlaneseq
    %v1684 = vshrl.u32 %v1683, 7
    %v1685 = vsub.s32 5, %v1684
    %v1686 = vrot.slane %v1621, %v1685
    %v1687 = vlaneseq
    %v1688 = vshrl.u32 %v1687, 7
    %v1689 = vsub.s32 5, %v1688
    %v1690 = vrot.slane %v1623, %v1689
    %v1691 = vmul.f32 %v1573, %v1682
    %v1692 = vmul.f32 %v1574, %v1686
    %v1693 = vmul.f32 %v1575, %v1690
    %v1694 = vsel %vm1678, %v1691, 0.0
    %v1695 = vsel %vm1678, %v1692, 0.0
    %v1696 = vsel %vm1678, %v1693, 0.0
    %1698 = vset.pattern.permute.xlu0 5
    %1699 = vperm.xlu0 %1698, %v1694
    %v1700 = vpop.permute.xlu0 %1699
    %1703 = vset.pattern.permute.xlu0 5
    %1704 = vperm.xlu0 %1703, %v1695
    %v1705 = vpop.permute.xlu0 %1704
    %1708 = vset.pattern.permute.xlu0 5
    %1709 = vperm.xlu0 %1708, %v1696
    %v1710 = vpop.permute.xlu0 %1709
    %v1712 = vlaneseq
    %v1713 = vshrl.u32 %v1712, 7
    %v1714 = vsub.s32 5, %v1713
    %v1715 = vrot.slane %v1573, %v1714
    %v1716 = vlaneseq
    %v1717 = vshrl.u32 %v1716, 7
    %v1718 = vsub.s32 5, %v1717
    %v1719 = vrot.slane %v1574, %v1718
    %v1720 = vlaneseq
    %v1721 = vshrl.u32 %v1720, 7
    %v1722 = vsub.s32 5, %v1721
    %v1723 = vrot.slane %v1575, %v1722
    %v1724 = vmul.f32 %v1700, %v1715
    %v1725 = vmul.f32 %v1705, %v1719
    %v1726 = vmul.f32 %v1710, %v1723
    %v1727 = vsub.f32 %v1573, %v1724
    %v1728 = vsub.f32 %v1574, %v1725
    %v1729 = vsub.f32 %v1575, %v1726
    %v1730 = vlaneseq
    %v1731 = vshrl.u32 %v1730, 7
    %v1732 = vsub.s32 5, %v1731
    %v1733 = vrot.slane %v1615, %v1732
    %v1734 = vlaneseq
    %v1735 = vshrl.u32 %v1734, 7
    %v1736 = vsub.s32 5, %v1735
    %v1737 = vrot.slane %v1616, %v1736
    %v1738 = vlaneseq
    %v1739 = vshrl.u32 %v1738, 7
    %v1740 = vsub.s32 5, %v1739
    %v1741 = vrot.slane %v1617, %v1740
    %1745 = vrot.lane.b32.xlu0 %v1733, 5
    %v1746 = vpop.permute.xlu0 %1745
    %1747 = vrot.lane.b32.xlu0 %v1737, 5
    %v1748 = vpop.permute.xlu0 %1747
    %1749 = vrot.lane.b32.xlu0 %v1741, 5
    %v1750 = vpop.permute.xlu0 %1749
    %v1754 = vmul.f32 %v1694, %v1746
    %v1755 = vmul.f32 %v1695, %v1748
    %v1756 = vmul.f32 %v1696, %v1750
    %1760 = vrot.lane.b32.xlu0 %v1754, 123
    %v1761 = vpop.permute.xlu0 %1760
    %1762 = vrot.lane.b32.xlu0 %v1755, 123
    %v1763 = vpop.permute.xlu0 %1762
    %1764 = vrot.lane.b32.xlu0 %v1756, 123
    %v1765 = vpop.permute.xlu0 %1764
    %v1769 = vsub.f32 %v1615, %v1761
    %v1770 = vsub.f32 %v1616, %v1763
    %v1771 = vsub.f32 %v1617, %v1765
    %v1772 = vrcp.pop %v1727
    %v1773 = vmul.f32 1.0, %v1772
    %v1774 = vrcp.pop %v1728
    %v1775 = vmul.f32 1.0, %v1774
    %v1776 = vrcp.pop %v1729
    %v1777 = vmul.f32 1.0, %v1776
    %v1778 = vmul.f32 %v1769, %v1769
    %v1779 = vmul.f32 %v1770, %v1770
    %v1780 = vmul.f32 %v1771, %v1771
    %1784 = vrot.lane.b32.xlu0 %v1773, 122
    %v1785 = vpop.permute.xlu0 %1784
    %1786 = vrot.lane.b32.xlu0 %v1775, 122
    %v1787 = vpop.permute.xlu0 %1786
    %1788 = vrot.lane.b32.xlu0 %v1777, 122
    %v1789 = vpop.permute.xlu0 %1788
    %v1793 = vmul.f32 %v1778, %v1785
    %v1794 = vmul.f32 %v1779, %v1787
    %v1795 = vmul.f32 %v1780, %v1789
    %v1799 = vrot.slane %v1793, 6
    %v1800 = vrot.slane %v1794, 6
    %v1801 = vrot.slane %v1795, 6
    %v1805 = vadd.f32 %v1651, %v1799
    %v1806 = vadd.f32 %v1652, %v1800
    %v1807 = vadd.f32 %v1653, %v1801
    %v1808 = vlog2.pop %v1727
    %v1809 = vmul.f32 %v1808, 0.6931472
    %v1810 = vlog2.pop %v1728
    %v1811 = vmul.f32 %v1810, 0.6931472
    %v1812 = vlog2.pop %v1729
    %v1813 = vmul.f32 %v1812, 0.6931472
    %v1817 = vrot.slane %v1809, 6
    %v1818 = vrot.slane %v1811, 6
    %v1819 = vrot.slane %v1813, 6
    %1820 = vrot.lane.b32.xlu0 %v1817, 122
    %v1821 = vpop.permute.xlu0 %1820
    %1822 = vrot.lane.b32.xlu0 %v1818, 122
    %v1823 = vpop.permute.xlu0 %1822
    %1824 = vrot.lane.b32.xlu0 %v1819, 122
    %v1825 = vpop.permute.xlu0 %1824
    %v1829 = vadd.f32 %v1675, %v1821
    %v1830 = vadd.f32 %v1676, %v1823
    %v1831 = vadd.f32 %v1677, %v1825
    %vm1832 = vcmp.gt.s32.totalorder %v899, 6
    %v1833 = vlaneseq
    %v1834 = vshrl.u32 %v1833, 7
    %v1835 = vsub.s32 6, %v1834
    %v1836 = vrot.slane %v1773, %v1835
    %v1837 = vlaneseq
    %v1838 = vshrl.u32 %v1837, 7
    %v1839 = vsub.s32 6, %v1838
    %v1840 = vrot.slane %v1775, %v1839
    %v1841 = vlaneseq
    %v1842 = vshrl.u32 %v1841, 7
    %v1843 = vsub.s32 6, %v1842
    %v1844 = vrot.slane %v1777, %v1843
    %v1845 = vmul.f32 %v1727, %v1836
    %v1846 = vmul.f32 %v1728, %v1840
    %v1847 = vmul.f32 %v1729, %v1844
    %v1848 = vsel %vm1832, %v1845, 0.0
    %v1849 = vsel %vm1832, %v1846, 0.0
    %v1850 = vsel %vm1832, %v1847, 0.0
    %1852 = vset.pattern.permute.xlu0 6
    %1853 = vperm.xlu0 %1852, %v1848
    %v1854 = vpop.permute.xlu0 %1853
    %1857 = vset.pattern.permute.xlu0 6
    %1858 = vperm.xlu0 %1857, %v1849
    %v1859 = vpop.permute.xlu0 %1858
    %1862 = vset.pattern.permute.xlu0 6
    %1863 = vperm.xlu0 %1862, %v1850
    %v1864 = vpop.permute.xlu0 %1863
    %v1866 = vlaneseq
    %v1867 = vshrl.u32 %v1866, 7
    %v1868 = vsub.s32 6, %v1867
    %v1869 = vrot.slane %v1727, %v1868
    %v1870 = vlaneseq
    %v1871 = vshrl.u32 %v1870, 7
    %v1872 = vsub.s32 6, %v1871
    %v1873 = vrot.slane %v1728, %v1872
    %v1874 = vlaneseq
    %v1875 = vshrl.u32 %v1874, 7
    %v1876 = vsub.s32 6, %v1875
    %v1877 = vrot.slane %v1729, %v1876
    %v1878 = vmul.f32 %v1854, %v1869
    %v1879 = vmul.f32 %v1859, %v1873
    %v1880 = vmul.f32 %v1864, %v1877
    %v1881 = vsub.f32 %v1727, %v1878
    %v1882 = vsub.f32 %v1728, %v1879
    %v1883 = vsub.f32 %v1729, %v1880
    %v1884 = vlaneseq
    %v1885 = vshrl.u32 %v1884, 7
    %v1886 = vsub.s32 6, %v1885
    %v1887 = vrot.slane %v1769, %v1886
    %v1888 = vlaneseq
    %v1889 = vshrl.u32 %v1888, 7
    %v1890 = vsub.s32 6, %v1889
    %v1891 = vrot.slane %v1770, %v1890
    %v1892 = vlaneseq
    %v1893 = vshrl.u32 %v1892, 7
    %v1894 = vsub.s32 6, %v1893
    %v1895 = vrot.slane %v1771, %v1894
    %1899 = vrot.lane.b32.xlu0 %v1887, 6
    %v1900 = vpop.permute.xlu0 %1899
    %1901 = vrot.lane.b32.xlu0 %v1891, 6
    %v1902 = vpop.permute.xlu0 %1901
    %1903 = vrot.lane.b32.xlu0 %v1895, 6
    %v1904 = vpop.permute.xlu0 %1903
    %v1908 = vmul.f32 %v1848, %v1900
    %v1909 = vmul.f32 %v1849, %v1902
    %v1910 = vmul.f32 %v1850, %v1904
    %1914 = vrot.lane.b32.xlu0 %v1908, 122
    %v1915 = vpop.permute.xlu0 %1914
    %1916 = vrot.lane.b32.xlu0 %v1909, 122
    %v1917 = vpop.permute.xlu0 %1916
    %1918 = vrot.lane.b32.xlu0 %v1910, 122
    %v1919 = vpop.permute.xlu0 %1918
    %v1923 = vsub.f32 %v1769, %v1915
    %v1924 = vsub.f32 %v1770, %v1917
    %v1925 = vsub.f32 %v1771, %v1919
    %v1926 = vrcp.pop %v1881
    %v1927 = vmul.f32 1.0, %v1926
    %v1928 = vrcp.pop %v1882
    %v1929 = vmul.f32 1.0, %v1928
    %v1930 = vrcp.pop %v1883
    %v1931 = vmul.f32 1.0, %v1930
    %v1932 = vmul.f32 %v1923, %v1923
    %v1933 = vmul.f32 %v1924, %v1924
    %v1934 = vmul.f32 %v1925, %v1925
    %1938 = vrot.lane.b32.xlu0 %v1927, 121
    %v1939 = vpop.permute.xlu0 %1938
    %1940 = vrot.lane.b32.xlu0 %v1929, 121
    %v1941 = vpop.permute.xlu0 %1940
    %1942 = vrot.lane.b32.xlu0 %v1931, 121
    %v1943 = vpop.permute.xlu0 %1942
    %v1947 = vmul.f32 %v1932, %v1939
    %v1948 = vmul.f32 %v1933, %v1941
    %v1949 = vmul.f32 %v1934, %v1943
    %v1953 = vrot.slane %v1947, 7
    %v1954 = vrot.slane %v1948, 7
    %v1955 = vrot.slane %v1949, 7
    %v1959 = vadd.f32 %v1805, %v1953
    %v1960 = vadd.f32 %v1806, %v1954
    %v1961 = vadd.f32 %v1807, %v1955
    %v1962 = vlog2.pop %v1881
    %v1963 = vmul.f32 %v1962, 0.6931472
    %v1964 = vlog2.pop %v1882
    %v1965 = vmul.f32 %v1964, 0.6931472
    %v1966 = vlog2.pop %v1883
    %v1967 = vmul.f32 %v1966, 0.6931472
    %v1971 = vrot.slane %v1963, 7
    %v1972 = vrot.slane %v1965, 7
    %v1973 = vrot.slane %v1967, 7
    %1974 = vrot.lane.b32.xlu0 %v1971, 121
    %v1975 = vpop.permute.xlu0 %1974
    %1976 = vrot.lane.b32.xlu0 %v1972, 121
    %v1977 = vpop.permute.xlu0 %1976
    %1978 = vrot.lane.b32.xlu0 %v1973, 121
    %v1979 = vpop.permute.xlu0 %1978
    %v1983 = vadd.f32 %v1829, %v1975
    %v1984 = vadd.f32 %v1830, %v1977
    %v1985 = vadd.f32 %v1831, %v1979
    %v1986 = vadd.f32 %v1959, %v1983
    %v1987 = vadd.f32 %v1960, %v1984
    %v1988 = vadd.f32 %v1961, %v1985
    %v1989 = vadd.f32 %v1986, %v1987
    %v1990 = vadd.f32 %v1989, %v1988
    %v1991 = vmul.f32 %v1990, 0.5
    %v1992 = vadd.f32 %v1991, 22.054525
    %vm1993 = vcmask 0
    %1994 = vst.msk [vmem:[#allocation7] sm:$0x1] %vm1993, %v1992
    // Predicated region
    $region26: #{tpu_custom_call.1} parent=1 // pred_check
      _
    $region27: #{tpu_custom_call.1} parent=1 // pred_check_branch
      %1996 = sbr.rel (0) target = $region29
    $region28: #{tpu_custom_call.1} parent=1 // pred_region
      %s1998 = ssub.s32 16, 16
      %1999 = vsyncadd [#allocation4], %s1998
      %s2001 = sshll.u32 [#allocation7], 4
      %s2002 = int_to_ptr.vmem [resolvable:$true] %s2001
      %2004 = dma.vmem_to_hbm [thread:$0]  %s2002, 16, %s4, [#allocation4]
    $region29: #{tpu_custom_call.1} parent=1 // pred_fallthru
      _
    // Predicated region
    $region30: #{tpu_custom_call.1} parent=1 // pred_check
      _
    $region31: #{tpu_custom_call.1} parent=1 // pred_check_branch
      %2006 = sbr.rel (0) target = $region33
    $region32: #{tpu_custom_call.1} parent=1 // pred_region
      %2007 = dma.done [#allocation4], 16
    $region33: #{tpu_custom_call.1} parent=1 // pred_fallthru
      _
    %2008 = vsyncpa [#allocation3], 1
    %2009 = vsyncpa [#allocation4], 1
    %2010 = vsyncpa [#allocation5], 1

</llo_original>
